<compile_context>
chip_gen: v5e
topology: v5e:2x2
jax: 0.10.0
libtpu: 0.0.40
codegen_flags: <defaults>
</compile_context>

<pallas_src>
import math

import jax
import jax.numpy as jnp
import numpy as np
from jax.experimental import pallas as pl
from jax.experimental.pallas import tpu as pltpu

SEQ_LEN = 8
D_MODEL = 32
HEADS = 4
HEAD_DIM = D_MODEL // HEADS
FF_INNER = 64          # `inner_num` in ff()
LN_EPS = 1e-5          # nn.LayerNorm default
HP = jax.lax.Precision.HIGHEST   # only for the pure-JAX reference / host fusion

# Default batch tile (sequences per grid step). Sweep 128..512 per chip;
# keep it lower on v7x (64 MiB physical VMEM per TC vs 128 MiB on v5e/v6e).
MAX_BLOCK_B = 256


# ----------------------------- Pallas kernel --------------------------------
def decoder_kernel(xq_ref, xkv_ref, w1_ref, w2_ref, wff_ref, vec_ref, out_ref):
    Bt, S, D = xq_ref.shape
    M = Bt * S
    H, Hd, I = HEADS, HEAD_DIM, FF_INNER
    bf16 = jnp.bfloat16

    # (Bt, S, D) f32 -> (Bt*S, D): free (S == 8 == f32 sublane tile height).
    xq = xq_ref[...].reshape(M, D)
    xkv = xkv_ref[...].reshape(M, D)
    w1 = w1_ref[...]        # (D, 4D) bf16: [Wqkv1_fused | Wout1]
    w2 = w2_ref[...]        # (D, 4D) bf16: [Wq2 | Wk2 | Wv2 | Wout2] (fused)
    wff = wff_ref[...]      # (D+3I, I) bf16: rows = [ffw0; ffw1; ffw2; ffw3|pad]
    vec = vec_ref[...]      # (16, 128) f32: biases / LN params / PReLU slopes

    def mm(a, b):
        # Explicit bf16 operands -> deterministic single-pass MXU matmul,
        # f32 accumulation (no DEFAULT-precision ambiguity).
        return jnp.dot(a.astype(bf16), b.astype(bf16),
                       preferred_element_type=jnp.float32)

    def layer_norm(x, gamma, beta):      # f32 VPU/EUP math
        mean = jnp.mean(x, axis=-1, keepdims=True)
        var = jnp.mean(jnp.square(x - mean), axis=-1, keepdims=True)
        return (x - mean) * jax.lax.rsqrt(var + LN_EPS) * gamma + beta

    def prelu(x, a):        # a: (1, I) broadcast row, f32
        return jnp.where(x >= 0.0, x, a * x)

    def attention(q2d, k2d, v2d, wout, bout):
        # q2d/k2d/v2d: (M, D) f32, already (pre+in)-projected; heads on lanes.
        # Per-head loop with Bt-batched einsums; the explicit-head-axis 4D
        # einsum variant needs a (Bt,S,H,Hd) relayout and was not adopted
        # without a bundle-dump comparison.
        q3 = q2d.reshape(Bt, S, D).astype(bf16)
        k3 = k2d.reshape(Bt, S, D).astype(bf16)
        v3 = v2d.reshape(Bt, S, D).astype(bf16)
        scale = 1.0 / math.sqrt(Hd)
        ctx_heads = []
        for h in range(H):               # static unroll
            lo = h * Hd
            qs = q3[:, :, lo:lo + Hd]
            ks = k3[:, :, lo:lo + Hd]
            vs = v3[:, :, lo:lo + Hd]
            s = jnp.einsum("bqd,bkd->bqk", qs, ks,
                           preferred_element_type=jnp.float32) * scale
            m = jnp.max(s, axis=-1, keepdims=True)
            e = jnp.exp(s - m)                                   # f32
            p = e * pl.reciprocal(jnp.sum(e, axis=-1, keepdims=True),
                                  approx=True)                   # EUP divide
            ctx = jnp.einsum("bqk,bkd->bqd", p.astype(bf16), vs,
                             preferred_element_type=jnp.float32)  # (Bt,S,Hd)
            ctx_heads.append(ctx.reshape(M, Hd))
        # Merge the 4 heads on lanes and apply out_proj as ONE K=D matmul
        # (replaces four K=8 matmuls -> ~4x fewer MXU passes).
        ctx_all = jnp.concatenate(ctx_heads, axis=-1)            # (M, D) f32
        return mm(ctx_all, wout) + bout

    # ---- attn1 (self-attn on xq): one fused (D, 3D) projection --------------
    qkv = mm(xq, w1[:, 0:3 * D]) + vec[0:1, 0:3 * D]
    a1 = attention(qkv[:, 0:D], qkv[:, D:2 * D], qkv[:, 2 * D:3 * D],
                   w1[:, 3 * D:4 * D], vec[1:2, 0:D])
    x = xq + a1
    x = layer_norm(x, vec[5:6, 0:D], vec[6:7, 0:D])

    # ---- attn2 (cross-attn: q = x, k = v = xkv) ------------------------------
    q2 = mm(x, w2[:, 0:D]) + vec[2:3, 0:D]
    kv2 = mm(xkv, w2[:, D:3 * D]) + vec[3:4, 0:2 * D]
    a2 = attention(q2, kv2[:, 0:D], kv2[:, D:2 * D],
                   w2[:, 3 * D:4 * D], vec[4:5, 0:D])
    x = x + a2
    x = layer_norm(x, vec[7:8, 0:D], vec[8:9, 0:D])

    # ---- feed-forward: Linear-PReLU x3 then Linear ---------------------------
    h = prelu(mm(x, wff[0:D, :]) + vec[9:10, 0:I], vec[13:14, 0:I])
    h = prelu(mm(h, wff[D:D + I, :]) + vec[10:11, 0:I], vec[14:15, 0:I])
    h = prelu(mm(h, wff[D + I:D + 2 * I, :]) + vec[11:12, 0:I], vec[15:16, 0:I])
    h = mm(h, wff[D + 2 * I:D + 3 * I, 0:D]) + vec[12:13, 0:D]

    out_ref[...] = (x + h).reshape(Bt, S, D)


# ------------------------------- wrapper -------------------------------------
def decoder_forward(xq, xkv, packed, block_b=None):
    w1, w2, wff, vec = packed
    B, S, D = xq.shape
    assert S == SEQ_LEN and D == D_MODEL

    # ---- batch tile choice: big tiles amortize per-step overhead, but keep
    # at least 2 grid steps so v7x can shard the "parallel" axis across TCs.
    if block_b is None:
        block_b = MAX_BLOCK_B
    block_b = max(1, min(block_b, B))
    if B > 1:
        block_b = max(1, min(block_b, pl.cdiv(B, 2)))
    grid_b = pl.cdiv(B, block_b)          # ragged tail handled by Pallas

    # ---- explicit scoped-VMEM sizing (v5e default is only 16 MiB; v7x has
    # only 64 MiB physical). Per sequence: double-buffered in/out blocks plus
    # headroom for the f32 (8,128)-padded intermediates kept live per step.
    vmem_cap = 64 * 1024 * 1024
    try:
        info = pltpu.get_tpu_info()
        vmem_cap = int(getattr(info, "vmem_capacity_bytes", vmem_cap))
    except Exception:
        pass
    per_seq = (2 * 2 * 8 * 128 * 4        # 2 f32 inputs, double buffered
               + 2 * 8 * 128 * 4          # f32 output, double buffered
               + 16 * 8 * 128 * 4)        # ~16 live f32 intermediates / sequence
    vmem_limit = block_b * per_seq + (4 << 20)
    vmem_limit = int(min(max(vmem_limit, 32 << 20), int(0.75 * vmem_cap)))

    out = pl.pallas_call(
        decoder_kernel,
        out_shape=jax.ShapeDtypeStruct((B, S, D), jnp.float32),
        grid=(grid_b,),
        in_specs=[
            pl.BlockSpec((block_b, S, D), lambda b: (b, 0, 0)),
            pl.BlockSpec((block_b, S, D), lambda b: (b, 0, 0)),
            pl.BlockSpec(w1.shape, lambda b: (0, 0)),
            pl.BlockSpec(w2.shape, lambda b: (0, 0)),
            pl.BlockSpec(wff.shape, lambda b: (0, 0)),
            pl.BlockSpec(vec.shape, lambda b: (0, 0)),
        ],
        out_specs=pl.BlockSpec((block_b, S, D), lambda b: (b, 0, 0)),
        compiler_params=pltpu.CompilerParams(
            dimension_semantics=("parallel",),      # batch axis -> both TCs on v7x
            vmem_limit_bytes=vmem_limit),
    )(xq, xkv, w1, w2, wff, vec)
    return out


# ---------------- host-side weight fusion / packing --------------------------
def pack_params(p):
    D, I = D_MODEL, FF_INNER

    def fuse(pre):
        # x @ Wpre @ Win + (bpre @ Win + bin)  ==  x @ Wf + bf
        wpre, bpre = p[f"{pre}_wpre"], p[f"{pre}_bpre"]     # (3,D,D), (3,D)
        win, bin_ = p[f"{pre}_win"], p[f"{pre}_bin"]        # (3,D,D), (3,D)
        wf = jnp.einsum("cij,cjk->cik", wpre, win, precision=HP)
        bf = jnp.einsum("cj,cjk->ck", bpre, win, precision=HP) + bin_
        return wf, bf

    wf1, bf1 = fuse("a1")
    wf2, bf2 = fuse("a2")

    # attn1 weights: [Wq|Wk|Wv fused (D,3D) | Wout (D,D)] -> (32, 128)
    w1 = jnp.concatenate([wf1[0], wf1[1], wf1[2], p["a1_wout"]], axis=1)
    # attn2 weights: [Wq | Wk | Wv | Wout] -> (32, 128)
    w2 = jnp.concatenate([wf2[0], wf2[1], wf2[2], p["a2_wout"]], axis=1)
    # FF weights stacked along rows: (32+64+64+64, 64); ffw3 lane-padded
    ffw3_pad = jnp.pad(p["ffw3"], ((0, 0), (0, I - D)))
    wff = jnp.concatenate([p["ffw0"], p["ffw1"], p["ffw2"], ffw3_pad], axis=0)

    def row(v, width=128):
        v = jnp.asarray(v, jnp.float32).reshape(-1)
        return jnp.pad(v, (0, width - v.shape[0]))

    vec = jnp.stack([
        row(jnp.concatenate([bf1[0], bf1[1], bf1[2]])),   # 0: fused qkv bias (96)
        row(p["a1_bout"]),                                # 1: out_proj bias 1
        row(bf2[0]),                                      # 2: q bias (attn2)
        row(jnp.concatenate([bf2[1], bf2[2]])),           # 3: kv bias (attn2)
        row(p["a2_bout"]),                                # 4: out_proj bias 2
        row(p["ln1"][0]), row(p["ln1"][1]),               # 5,6: LN1 gamma/beta
        row(p["ln2"][0]), row(p["ln2"][1]),               # 7,8: LN2 gamma/beta
        row(p["ffb012"][0]), row(p["ffb012"][1]), row(p["ffb012"][2]),  # 9-11
        row(p["ffb3"]),                                   # 12: ff final bias
        row(jnp.full((I,), p["alpha"][0])),               # 13: PReLU slope 0
        row(jnp.full((I,), p["alpha"][1])),               # 14: PReLU slope 1
        row(jnp.full((I,), p["alpha"][2])),               # 15: PReLU slope 2
    ], axis=0)                                            # (16, 128) f32

    # Weights live in HBM as bf16 (single-pass MXU, half the weight DMA);
    # bias / LN / PReLU vector stays f32 (added/used in f32 VPU math).
    return (w1.astype(jnp.bfloat16), w2.astype(jnp.bfloat16),
            wff.astype(jnp.bfloat16), vec)


# ------------------------ deterministic parameter init -----------------------
def init_params(key):
    keys = jax.random.split(key, 32)
    it = iter(keys)

    def w(shape, fan_in):
        return jax.random.normal(next(it), shape, jnp.float32) / math.sqrt(fan_in)

    D, I = D_MODEL, FF_INNER
    p = {}
    for name in ("a1", "a2"):
        p[f"{name}_wpre"] = w((3, D, D), D)   # the 3 "fn" linears
        p[f"{name}_bpre"] = w((3, D), D)
        p[f"{name}_win"] = w((3, D, D), D)    # MHA in_proj (q,k,v)
        p[f"{name}_bin"] = w((3, D), D)
        p[f"{name}_wout"] = w((D, D), D)      # MHA out_proj
        p[f"{name}_bout"] = w((1, D), D)
    p["ln1"] = jnp.stack([1.0 + 0.1 * jax.random.normal(next(it), (D,), jnp.float32),
                          0.1 * jax.random.normal(next(it), (D,), jnp.float32)])
    p["ln2"] = jnp.stack([1.0 + 0.1 * jax.random.normal(next(it), (D,), jnp.float32),
                          0.1 * jax.random.normal(next(it), (D,), jnp.float32)])
    # ff(D, D, 3): Linear(D,64) PReLU Linear(64,64) PReLU Linear(64,64) PReLU Linear(64,D)
    p["ffw0"] = w((D, I), D)
    p["ffw1"] = w((I, I), I)
    p["ffw2"] = w((I, I), I)
    p["ffw3"] = w((I, D), I)
    p["ffb012"] = w((3, I), I)
    p["ffb3"] = w((1, D), I)
    p["alpha"] = jnp.array([0.25, 0.1, 0.3], jnp.float32)  # PReLU slopes
    return p


# ------------------------- pure-JAX reference (f32, unfused) ------------------
def ref_decoder(xq, xkv, p):
    def linear(x, w, b):
        return jnp.einsum("...i,io->...o", x, w, precision=HP) + b

    def mha(q, k, v, pre):
        wpre, bpre = p[f"{pre}_wpre"], p[f"{pre}_bpre"]
        win, bin_ = p[f"{pre}_win"], p[f"{pre}_bin"]
        wout, bout = p[f"{pre}_wout"], p[f"{pre}_bout"]
        qp = linear(q, wpre[0], bpre[0]); kp = linear(k, wpre[1], bpre[1]); vp = linear(v, wpre[2], bpre[2])
        qh = linear(qp, win[0], bin_[0]); kh = linear(kp, win[1], bin_[1]); vh = linear(vp, win[2], bin_[2])
        B, S, D = qh.shape
        split = lambda t: t.reshape(B, S, HEADS, HEAD_DIM).transpose(0, 2, 1, 3)
        qs, ks, vs = split(qh), split(kh), split(vh)
        s = jnp.einsum("bhqd,bhkd->bhqk", qs, ks, precision=HP) / math.sqrt(HEAD_DIM)
        pr = jax.nn.softmax(s, axis=-1)
        ctx = jnp.einsum("bhqk,bhkd->bhqd", pr, vs, precision=HP)
        ctx = ctx.transpose(0, 2, 1, 3).reshape(B, S, D)
        return linear(ctx, wout, bout[0])

    def ln(x, g):
        mean = x.mean(-1, keepdims=True)
        var = jnp.square(x - mean).mean(-1, keepdims=True)
        return (x - mean) * jax.lax.rsqrt(var + LN_EPS) * g[0] + g[1]

    def prelu(x, a):
        return jnp.where(x >= 0, x, a * x)

    x = xq + mha(xq, xq, xq, "a1")
    x = ln(x, p["ln1"])
    x = x + mha(x, xkv, xkv, "a2")
    x = ln(x, p["ln2"])
    h = prelu(linear(x, p["ffw0"], p["ffb012"][0]), p["alpha"][0])
    h = prelu(linear(h, p["ffw1"], p["ffb012"][1]), p["alpha"][1])
    h = prelu(linear(h, p["ffw2"], p["ffb012"][2]), p["alpha"][2])
    h = linear(h, p["ffw3"], p["ffb3"][0])
    return x + h


if __name__ == "__main__":
    key = jax.random.PRNGKey(0)
    kx, kv, kp = jax.random.split(key, 3)
    B = 2
    xq = jax.random.normal(kx, (B, SEQ_LEN, D_MODEL), jnp.float32)
    xkv = jax.random.normal(kv, (B, SEQ_LEN, D_MODEL), jnp.float32)
    params = init_params(kp)
    packed = pack_params(params)

    out = jax.block_until_ready(decoder_forward(xq, xkv, packed))
    ref = jax.block_until_ready(ref_decoder(xq, xkv, params))
    assert out.shape == (B, SEQ_LEN, D_MODEL)
    # Kernel matmuls run with explicit bf16 operands (f32 accumulation);
    # reference is full f32 HIGHEST, so tolerance reflects bf16 accuracy.
    np.testing.assert_allclose(np.asarray(out), np.asarray(ref), rtol=4e-2, atol=4e-2)

    # Exercise the no-host-pad ragged-tail path + an explicit block_b sweep point.
    kx2, kv2 = jax.random.split(jax.random.PRNGKey(1))
    B2 = 13
    xq2 = jax.random.normal(kx2, (B2, SEQ_LEN, D_MODEL), jnp.float32)
    xkv2 = jax.random.normal(kv2, (B2, SEQ_LEN, D_MODEL), jnp.float32)
    ref2 = jax.block_until_ready(ref_decoder(xq2, xkv2, params))
    out2 = jax.block_until_ready(decoder_forward(xq2, xkv2, packed))            # auto block_b
    np.testing.assert_allclose(np.asarray(out2), np.asarray(ref2), rtol=4e-2, atol=4e-2)
    out3 = jax.block_until_ready(decoder_forward(xq2, xkv2, packed, block_b=4))  # ragged: 4+4+4+1
    np.testing.assert_allclose(np.asarray(out3), np.asarray(ref2), rtol=4e-2, atol=4e-2)

    print("KERNEL_OK")
</pallas_src>

<mosaic_0001>
module attributes {stable_mosaic.version = 11 : i64} {
  func.func @decoder_kernel(%arg0: i32, %arg1: memref<1x8x32xf32, #tpu.memory_space<vmem>>, %arg2: memref<1x8x32xf32, #tpu.memory_space<vmem>>, %arg3: memref<32x128xbf16, #tpu.memory_space<vmem>>, %arg4: memref<32x128xbf16, #tpu.memory_space<vmem>>, %arg5: memref<224x64xbf16, #tpu.memory_space<vmem>>, %arg6: memref<16x128xf32, #tpu.memory_space<vmem>>, %arg7: memref<1x8x32xf32, #tpu.memory_space<vmem>>) attributes {dimension_semantics = [#tpu.dimension_semantics<parallel>], iteration_bounds = array<i64: 2>, scalar_prefetch = 0 : i64, scratch_operands = 0 : i64, tpu.core_type = #tpu.core_type<tc>, window_params = [{transform_indices = @transform_0, window_bounds = array<i64: 1, 8, 32>}, {transform_indices = @transform_1, window_bounds = array<i64: 1, 8, 32>}, {pipeline_mode = #tpu.pipeline_mode<synchronous>, transform_indices = @transform_2, window_bounds = array<i64: 32, 128>}, {pipeline_mode = #tpu.pipeline_mode<synchronous>, transform_indices = @transform_3, window_bounds = array<i64: 32, 128>}, {pipeline_mode = #tpu.pipeline_mode<synchronous>, transform_indices = @transform_4, window_bounds = array<i64: 224, 64>}, {pipeline_mode = #tpu.pipeline_mode<synchronous>, transform_indices = @transform_5, window_bounds = array<i64: 16, 128>}, {transform_indices = @transform_6, window_bounds = array<i64: 1, 8, 32>}]} {
    %c0 = arith.constant 0 : index
    %c0_0 = arith.constant 0 : index
    %c0_1 = arith.constant 0 : index
    %0 = vector.load %arg1[%c0, %c0_0, %c0_1] : memref<1x8x32xf32, #tpu.memory_space<vmem>>, vector<1x8x32xf32>
    %1 = vector.shape_cast %0 : vector<1x8x32xf32> to vector<8x32xf32>
    %c0_2 = arith.constant 0 : index
    %c0_3 = arith.constant 0 : index
    %c0_4 = arith.constant 0 : index
    %2 = vector.load %arg2[%c0_2, %c0_3, %c0_4] : memref<1x8x32xf32, #tpu.memory_space<vmem>>, vector<1x8x32xf32>
    %3 = vector.shape_cast %2 : vector<1x8x32xf32> to vector<8x32xf32>
    %c0_5 = arith.constant 0 : index
    %c0_6 = arith.constant 0 : index
    %4 = vector.load %arg3[%c0_5, %c0_6] : memref<32x128xbf16, #tpu.memory_space<vmem>>, vector<32x128xbf16>
    %c0_7 = arith.constant 0 : index
    %c0_8 = arith.constant 0 : index
    %5 = vector.load %arg4[%c0_7, %c0_8] : memref<32x128xbf16, #tpu.memory_space<vmem>>, vector<32x128xbf16>
    %c0_9 = arith.constant 0 : index
    %c0_10 = arith.constant 0 : index
    %6 = vector.load %arg5[%c0_9, %c0_10] : memref<224x64xbf16, #tpu.memory_space<vmem>>, vector<224x64xbf16>
    %c0_11 = arith.constant 0 : index
    %c0_12 = arith.constant 0 : index
    %7 = vector.load %arg6[%c0_11, %c0_12] : memref<16x128xf32, #tpu.memory_space<vmem>>, vector<16x128xf32>
    %8 = vector.extract_strided_slice %4 {offsets = [0, 0], sizes = [32, 96], strides = [1, 1]} : vector<32x128xbf16> to vector<32x96xbf16>
    %9 = arith.truncf %1 : vector<8x32xf32> to vector<8x32xbf16>
    %cst = arith.constant dense<0.000000e+00> : vector<8x96xf32>
    %10 = tpu.matmul %9, %8, %cst {dimension_numbers = #tpu.dot_dimension_numbers<[1], [0], [0], [1], [0, 0, 1, 1], [], []>} : vector<8x32xbf16>, vector<32x96xbf16>, vector<8x96xf32> -> vector<8x96xf32>
    %11 = vector.extract_strided_slice %7 {offsets = [0, 0], sizes = [1, 96], strides = [1, 1]} : vector<16x128xf32> to vector<1x96xf32>
    %12 = vector.broadcast %11 : vector<1x96xf32> to vector<8x96xf32>
    %13 = arith.addf %10, %12 : vector<8x96xf32>
    %14 = vector.extract_strided_slice %13 {offsets = [0, 0], sizes = [8, 32], strides = [1, 1]} : vector<8x96xf32> to vector<8x32xf32>
    %15 = vector.extract_strided_slice %13 {offsets = [0, 32], sizes = [8, 32], strides = [1, 1]} : vector<8x96xf32> to vector<8x32xf32>
    %16 = vector.extract_strided_slice %13 {offsets = [0, 64], sizes = [8, 32], strides = [1, 1]} : vector<8x96xf32> to vector<8x32xf32>
    %17 = vector.extract_strided_slice %4 {offsets = [0, 96], sizes = [32, 32], strides = [1, 1]} : vector<32x128xbf16> to vector<32x32xbf16>
    %18 = vector.extract_strided_slice %7 {offsets = [1, 0], sizes = [1, 32], strides = [1, 1]} : vector<16x128xf32> to vector<1x32xf32>
    %19 = vector.shape_cast %14 : vector<8x32xf32> to vector<1x8x32xf32>
    %20 = arith.truncf %19 : vector<1x8x32xf32> to vector<1x8x32xbf16>
    %21 = vector.shape_cast %15 : vector<8x32xf32> to vector<1x8x32xf32>
    %22 = arith.truncf %21 : vector<1x8x32xf32> to vector<1x8x32xbf16>
    %23 = vector.shape_cast %16 : vector<8x32xf32> to vector<1x8x32xf32>
    %24 = arith.truncf %23 : vector<1x8x32xf32> to vector<1x8x32xbf16>
    %25 = vector.extract_strided_slice %20 {offsets = [0, 0, 0], sizes = [1, 8, 8], strides = [1, 1, 1]} : vector<1x8x32xbf16> to vector<1x8x8xbf16>
    %26 = vector.extract_strided_slice %22 {offsets = [0, 0, 0], sizes = [1, 8, 8], strides = [1, 1, 1]} : vector<1x8x32xbf16> to vector<1x8x8xbf16>
    %27 = vector.extract_strided_slice %24 {offsets = [0, 0, 0], sizes = [1, 8, 8], strides = [1, 1, 1]} : vector<1x8x32xbf16> to vector<1x8x8xbf16>
    "tpu.trace_start"() <{level = 10 : i32, message = "bqd,bkd->bqk"}> : () -> ()
    %cst_13 = arith.constant dense<0.000000e+00> : vector<1x8x8xf32>
    %28 = tpu.matmul %25, %26, %cst_13 {dimension_numbers = #tpu.dot_dimension_numbers<[2], [2], [1], [1], [0, 0, 0, 1, 1, 1], [0], [0]>} : vector<1x8x8xbf16>, vector<1x8x8xbf16>, vector<1x8x8xf32> -> vector<1x8x8xf32>
    "tpu.trace_stop"() : () -> ()
    %cst_14 = arith.constant 0.353553385 : f32
    %29 = vector.broadcast %cst_14 : f32 to vector<1x8x8xf32>
    %30 = arith.mulf %28, %29 : vector<1x8x8xf32>
    %cst_15 = arith.constant dense<0xFF800000> : vector<1x8xf32>
    %31 = vector.multi_reduction <maximumf>, %30, %cst_15 [2] : vector<1x8x8xf32> to vector<1x8xf32>
    %32 = vector.shape_cast %31 : vector<1x8xf32> to vector<1x8x1xf32>
    %33 = vector.broadcast %32 : vector<1x8x1xf32> to vector<1x8x8xf32>
    %34 = arith.subf %30, %33 : vector<1x8x8xf32>
    %35 = math.exp %34 : vector<1x8x8xf32>
    %cst_16 = arith.constant dense<0.000000e+00> : vector<1x8xf32>
    %36 = vector.multi_reduction <add>, %35, %cst_16 [2] : vector<1x8x8xf32> to vector<1x8xf32>
    %37 = vector.shape_cast %36 : vector<1x8xf32> to vector<1x8x1xf32>
    %38 = tpu.reciprocal %37 {approx = true} : vector<1x8x1xf32> -> vector<1x8x1xf32>
    %39 = vector.broadcast %38 : vector<1x8x1xf32> to vector<1x8x8xf32>
    %40 = arith.mulf %35, %39 : vector<1x8x8xf32>
    %41 = arith.truncf %40 : vector<1x8x8xf32> to vector<1x8x8xbf16>
    "tpu.trace_start"() <{level = 10 : i32, message = "bqk,bkd->bqd"}> : () -> ()
    %cst_17 = arith.constant dense<0.000000e+00> : vector<1x8x8xf32>
    %42 = tpu.matmul %41, %27, %cst_17 {dimension_numbers = #tpu.dot_dimension_numbers<[2], [1], [1], [2], [0, 0, 0, 1, 1, 2], [0], [0]>} : vector<1x8x8xbf16>, vector<1x8x8xbf16>, vector<1x8x8xf32> -> vector<1x8x8xf32>
    "tpu.trace_stop"() : () -> ()
    %43 = vector.shape_cast %42 : vector<1x8x8xf32> to vector<8x8xf32>
    %44 = vector.extract_strided_slice %20 {offsets = [0, 0, 8], sizes = [1, 8, 8], strides = [1, 1, 1]} : vector<1x8x32xbf16> to vector<1x8x8xbf16>
    %45 = vector.extract_strided_slice %22 {offsets = [0, 0, 8], sizes = [1, 8, 8], strides = [1, 1, 1]} : vector<1x8x32xbf16> to vector<1x8x8xbf16>
    %46 = vector.extract_strided_slice %24 {offsets = [0, 0, 8], sizes = [1, 8, 8], strides = [1, 1, 1]} : vector<1x8x32xbf16> to vector<1x8x8xbf16>
    "tpu.trace_start"() <{level = 10 : i32, message = "bqd,bkd->bqk"}> : () -> ()
    %cst_18 = arith.constant dense<0.000000e+00> : vector<1x8x8xf32>
    %47 = tpu.matmul %44, %45, %cst_18 {dimension_numbers = #tpu.dot_dimension_numbers<[2], [2], [1], [1], [0, 0, 0, 1, 1, 1], [0], [0]>} : vector<1x8x8xbf16>, vector<1x8x8xbf16>, vector<1x8x8xf32> -> vector<1x8x8xf32>
    "tpu.trace_stop"() : () -> ()
    %cst_19 = arith.constant 0.353553385 : f32
    %48 = vector.broadcast %cst_19 : f32 to vector<1x8x8xf32>
    %49 = arith.mulf %47, %48 : vector<1x8x8xf32>
    %cst_20 = arith.constant dense<0xFF800000> : vector<1x8xf32>
    %50 = vector.multi_reduction <maximumf>, %49, %cst_20 [2] : vector<1x8x8xf32> to vector<1x8xf32>
    %51 = vector.shape_cast %50 : vector<1x8xf32> to vector<1x8x1xf32>
    %52 = vector.broadcast %51 : vector<1x8x1xf32> to vector<1x8x8xf32>
    %53 = arith.subf %49, %52 : vector<1x8x8xf32>
    %54 = math.exp %53 : vector<1x8x8xf32>
    %cst_21 = arith.constant dense<0.000000e+00> : vector<1x8xf32>
    %55 = vector.multi_reduction <add>, %54, %cst_21 [2] : vector<1x8x8xf32> to vector<1x8xf32>
    %56 = vector.shape_cast %55 : vector<1x8xf32> to vector<1x8x1xf32>
    %57 = tpu.reciprocal %56 {approx = true} : vector<1x8x1xf32> -> vector<1x8x1xf32>
    %58 = vector.broadcast %57 : vector<1x8x1xf32> to vector<1x8x8xf32>
    %59 = arith.mulf %54, %58 : vector<1x8x8xf32>
    %60 = arith.truncf %59 : vector<1x8x8xf32> to vector<1x8x8xbf16>
    "tpu.trace_start"() <{level = 10 : i32, message = "bqk,bkd->bqd"}> : () -> ()
    %cst_22 = arith.constant dense<0.000000e+00> : vector<1x8x8xf32>
    %61 = tpu.matmul %60, %46, %cst_22 {dimension_numbers = #tpu.dot_dimension_numbers<[2], [1], [1], [2], [0, 0, 0, 1, 1, 2], [0], [0]>} : vector<1x8x8xbf16>, vector<1x8x8xbf16>, vector<1x8x8xf32> -> vector<1x8x8xf32>
    "tpu.trace_stop"() : () -> ()
    %62 = vector.shape_cast %61 : vector<1x8x8xf32> to vector<8x8xf32>
    %63 = vector.extract_strided_slice %20 {offsets = [0, 0, 16], sizes = [1, 8, 8], strides = [1, 1, 1]} : vector<1x8x32xbf16> to vector<1x8x8xbf16>
    %64 = vector.extract_strided_slice %22 {offsets = [0, 0, 16], sizes = [1, 8, 8], strides = [1, 1, 1]} : vector<1x8x32xbf16> to vector<1x8x8xbf16>
    %65 = vector.extract_strided_slice %24 {offsets = [0, 0, 16], sizes = [1, 8, 8], strides = [1, 1, 1]} : vector<1x8x32xbf16> to vector<1x8x8xbf16>
    "tpu.trace_start"() <{level = 10 : i32, message = "bqd,bkd->bqk"}> : () -> ()
    %cst_23 = arith.constant dense<0.000000e+00> : vector<1x8x8xf32>
    %66 = tpu.matmul %63, %64, %cst_23 {dimension_numbers = #tpu.dot_dimension_numbers<[2], [2], [1], [1], [0, 0, 0, 1, 1, 1], [0], [0]>} : vector<1x8x8xbf16>, vector<1x8x8xbf16>, vector<1x8x8xf32> -> vector<1x8x8xf32>
    "tpu.trace_stop"() : () -> ()
    %cst_24 = arith.constant 0.353553385 : f32
    %67 = vector.broadcast %cst_24 : f32 to vector<1x8x8xf32>
    %68 = arith.mulf %66, %67 : vector<1x8x8xf32>
    %cst_25 = arith.constant dense<0xFF800000> : vector<1x8xf32>
    %69 = vector.multi_reduction <maximumf>, %68, %cst_25 [2] : vector<1x8x8xf32> to vector<1x8xf32>
    %70 = vector.shape_cast %69 : vector<1x8xf32> to vector<1x8x1xf32>
    %71 = vector.broadcast %70 : vector<1x8x1xf32> to vector<1x8x8xf32>
    %72 = arith.subf %68, %71 : vector<1x8x8xf32>
    %73 = math.exp %72 : vector<1x8x8xf32>
    %cst_26 = arith.constant dense<0.000000e+00> : vector<1x8xf32>
    %74 = vector.multi_reduction <add>, %73, %cst_26 [2] : vector<1x8x8xf32> to vector<1x8xf32>
    %75 = vector.shape_cast %74 : vector<1x8xf32> to vector<1x8x1xf32>
    %76 = tpu.reciprocal %75 {approx = true} : vector<1x8x1xf32> -> vector<1x8x1xf32>
    %77 = vector.broadcast %76 : vector<1x8x1xf32> to vector<1x8x8xf32>
    %78 = arith.mulf %73, %77 : vector<1x8x8xf32>
    %79 = arith.truncf %78 : vector<1x8x8xf32> to vector<1x8x8xbf16>
    "tpu.trace_start"() <{level = 10 : i32, message = "bqk,bkd->bqd"}> : () -> ()
    %cst_27 = arith.constant dense<0.000000e+00> : vector<1x8x8xf32>
    %80 = tpu.matmul %79, %65, %cst_27 {dimension_numbers = #tpu.dot_dimension_numbers<[2], [1], [1], [2], [0, 0, 0, 1, 1, 2], [0], [0]>} : vector<1x8x8xbf16>, vector<1x8x8xbf16>, vector<1x8x8xf32> -> vector<1x8x8xf32>
    "tpu.trace_stop"() : () -> ()
    %81 = vector.shape_cast %80 : vector<1x8x8xf32> to vector<8x8xf32>
    %82 = vector.extract_strided_slice %20 {offsets = [0, 0, 24], sizes = [1, 8, 8], strides = [1, 1, 1]} : vector<1x8x32xbf16> to vector<1x8x8xbf16>
    %83 = vector.extract_strided_slice %22 {offsets = [0, 0, 24], sizes = [1, 8, 8], strides = [1, 1, 1]} : vector<1x8x32xbf16> to vector<1x8x8xbf16>
    %84 = vector.extract_strided_slice %24 {offsets = [0, 0, 24], sizes = [1, 8, 8], strides = [1, 1, 1]} : vector<1x8x32xbf16> to vector<1x8x8xbf16>
    "tpu.trace_start"() <{level = 10 : i32, message = "bqd,bkd->bqk"}> : () -> ()
    %cst_28 = arith.constant dense<0.000000e+00> : vector<1x8x8xf32>
    %85 = tpu.matmul %82, %83, %cst_28 {dimension_numbers = #tpu.dot_dimension_numbers<[2], [2], [1], [1], [0, 0, 0, 1, 1, 1], [0], [0]>} : vector<1x8x8xbf16>, vector<1x8x8xbf16>, vector<1x8x8xf32> -> vector<1x8x8xf32>
    "tpu.trace_stop"() : () -> ()
    %cst_29 = arith.constant 0.353553385 : f32
    %86 = vector.broadcast %cst_29 : f32 to vector<1x8x8xf32>
    %87 = arith.mulf %85, %86 : vector<1x8x8xf32>
    %cst_30 = arith.constant dense<0xFF800000> : vector<1x8xf32>
    %88 = vector.multi_reduction <maximumf>, %87, %cst_30 [2] : vector<1x8x8xf32> to vector<1x8xf32>
    %89 = vector.shape_cast %88 : vector<1x8xf32> to vector<1x8x1xf32>
    %90 = vector.broadcast %89 : vector<1x8x1xf32> to vector<1x8x8xf32>
    %91 = arith.subf %87, %90 : vector<1x8x8xf32>
    %92 = math.exp %91 : vector<1x8x8xf32>
    %cst_31 = arith.constant dense<0.000000e+00> : vector<1x8xf32>
    %93 = vector.multi_reduction <add>, %92, %cst_31 [2] : vector<1x8x8xf32> to vector<1x8xf32>
    %94 = vector.shape_cast %93 : vector<1x8xf32> to vector<1x8x1xf32>
    %95 = tpu.reciprocal %94 {approx = true} : vector<1x8x1xf32> -> vector<1x8x1xf32>
    %96 = vector.broadcast %95 : vector<1x8x1xf32> to vector<1x8x8xf32>
    %97 = arith.mulf %92, %96 : vector<1x8x8xf32>
    %98 = arith.truncf %97 : vector<1x8x8xf32> to vector<1x8x8xbf16>
    "tpu.trace_start"() <{level = 10 : i32, message = "bqk,bkd->bqd"}> : () -> ()
    %cst_32 = arith.constant dense<0.000000e+00> : vector<1x8x8xf32>
    %99 = tpu.matmul %98, %84, %cst_32 {dimension_numbers = #tpu.dot_dimension_numbers<[2], [1], [1], [2], [0, 0, 0, 1, 1, 2], [0], [0]>} : vector<1x8x8xbf16>, vector<1x8x8xbf16>, vector<1x8x8xf32> -> vector<1x8x8xf32>
    "tpu.trace_stop"() : () -> ()
    %100 = vector.shape_cast %99 : vector<1x8x8xf32> to vector<8x8xf32>
    %101 = tpu.concatenate %43, %62, %81, %100 in 1 : vector<8x8xf32>, vector<8x8xf32>, vector<8x8xf32>, vector<8x8xf32> -> vector<8x32xf32>
    %102 = arith.truncf %101 : vector<8x32xf32> to vector<8x32xbf16>
    %cst_33 = arith.constant dense<0.000000e+00> : vector<8x32xf32>
    %103 = tpu.matmul %102, %17, %cst_33 {dimension_numbers = #tpu.dot_dimension_numbers<[1], [0], [0], [1], [0, 0, 1, 1], [], []>} : vector<8x32xbf16>, vector<32x32xbf16>, vector<8x32xf32> -> vector<8x32xf32>
    %104 = vector.broadcast %18 : vector<1x32xf32> to vector<8x32xf32>
    %105 = arith.addf %103, %104 : vector<8x32xf32>
    %106 = arith.addf %1, %105 : vector<8x32xf32>
    %107 = vector.extract_strided_slice %7 {offsets = [5, 0], sizes = [1, 32], strides = [1, 1]} : vector<16x128xf32> to vector<1x32xf32>
    %108 = vector.extract_strided_slice %7 {offsets = [6, 0], sizes = [1, 32], strides = [1, 1]} : vector<16x128xf32> to vector<1x32xf32>
    %cst_34 = arith.constant dense<0.000000e+00> : vector<8xf32>
    %109 = vector.multi_reduction <add>, %106, %cst_34 [1] : vector<8x32xf32> to vector<8xf32>
    %110 = vector.shape_cast %109 : vector<8xf32> to vector<8x1xf32>
    %cst_35 = arith.constant 3.200000e+01 : f32
    %111 = vector.broadcast %cst_35 : f32 to vector<8x1xf32>
    %112 = arith.divf %110, %111 : vector<8x1xf32>
    %113 = vector.broadcast %112 : vector<8x1xf32> to vector<8x32xf32>
    %114 = arith.subf %106, %113 : vector<8x32xf32>
    %115 = arith.mulf %114, %114 : vector<8x32xf32>
    %cst_36 = arith.constant dense<0.000000e+00> : vector<8xf32>
    %116 = vector.multi_reduction <add>, %115, %cst_36 [1] : vector<8x32xf32> to vector<8xf32>
    %117 = vector.shape_cast %116 : vector<8xf32> to vector<8x1xf32>
    %cst_37 = arith.constant 3.200000e+01 : f32
    %118 = vector.broadcast %cst_37 : f32 to vector<8x1xf32>
    %119 = arith.divf %117, %118 : vector<8x1xf32>
    %120 = vector.broadcast %112 : vector<8x1xf32> to vector<8x32xf32>
    %121 = arith.subf %106, %120 : vector<8x32xf32>
    %cst_38 = arith.constant 9.99999974E-6 : f32
    %122 = vector.broadcast %cst_38 : f32 to vector<8x1xf32>
    %123 = arith.addf %119, %122 : vector<8x1xf32>
    %124 = math.rsqrt %123 : vector<8x1xf32>
    %125 = vector.broadcast %124 : vector<8x1xf32> to vector<8x32xf32>
    %126 = arith.mulf %121, %125 : vector<8x32xf32>
    %127 = vector.broadcast %107 : vector<1x32xf32> to vector<8x32xf32>
    %128 = arith.mulf %126, %127 : vector<8x32xf32>
    %129 = vector.broadcast %108 : vector<1x32xf32> to vector<8x32xf32>
    %130 = arith.addf %128, %129 : vector<8x32xf32>
    %131 = vector.extract_strided_slice %5 {offsets = [0, 0], sizes = [32, 32], strides = [1, 1]} : vector<32x128xbf16> to vector<32x32xbf16>
    %132 = arith.truncf %130 : vector<8x32xf32> to vector<8x32xbf16>
    %cst_39 = arith.constant dense<0.000000e+00> : vector<8x32xf32>
    %133 = tpu.matmul %132, %131, %cst_39 {dimension_numbers = #tpu.dot_dimension_numbers<[1], [0], [0], [1], [0, 0, 1, 1], [], []>} : vector<8x32xbf16>, vector<32x32xbf16>, vector<8x32xf32> -> vector<8x32xf32>
    %134 = vector.extract_strided_slice %7 {offsets = [2, 0], sizes = [1, 32], strides = [1, 1]} : vector<16x128xf32> to vector<1x32xf32>
    %135 = vector.broadcast %134 : vector<1x32xf32> to vector<8x32xf32>
    %136 = arith.addf %133, %135 : vector<8x32xf32>
    %137 = vector.extract_strided_slice %5 {offsets = [0, 32], sizes = [32, 64], strides = [1, 1]} : vector<32x128xbf16> to vector<32x64xbf16>
    %138 = arith.truncf %3 : vector<8x32xf32> to vector<8x32xbf16>
    %cst_40 = arith.constant dense<0.000000e+00> : vector<8x64xf32>
    %139 = tpu.matmul %138, %137, %cst_40 {dimension_numbers = #tpu.dot_dimension_numbers<[1], [0], [0], [1], [0, 0, 1, 1], [], []>} : vector<8x32xbf16>, vector<32x64xbf16>, vector<8x64xf32> -> vector<8x64xf32>
    %140 = vector.extract_strided_slice %7 {offsets = [3, 0], sizes = [1, 64], strides = [1, 1]} : vector<16x128xf32> to vector<1x64xf32>
    %141 = vector.broadcast %140 : vector<1x64xf32> to vector<8x64xf32>
    %142 = arith.addf %139, %141 : vector<8x64xf32>
    %143 = vector.extract_strided_slice %142 {offsets = [0, 0], sizes = [8, 32], strides = [1, 1]} : vector<8x64xf32> to vector<8x32xf32>
    %144 = vector.extract_strided_slice %142 {offsets = [0, 32], sizes = [8, 32], strides = [1, 1]} : vector<8x64xf32> to vector<8x32xf32>
    %145 = vector.extract_strided_slice %5 {offsets = [0, 96], sizes = [32, 32], strides = [1, 1]} : vector<32x128xbf16> to vector<32x32xbf16>
    %146 = vector.extract_strided_slice %7 {offsets = [4, 0], sizes = [1, 32], strides = [1, 1]} : vector<16x128xf32> to vector<1x32xf32>
    %147 = vector.shape_cast %136 : vector<8x32xf32> to vector<1x8x32xf32>
    %148 = arith.truncf %147 : vector<1x8x32xf32> to vector<1x8x32xbf16>
    %149 = vector.shape_cast %143 : vector<8x32xf32> to vector<1x8x32xf32>
    %150 = arith.truncf %149 : vector<1x8x32xf32> to vector<1x8x32xbf16>
    %151 = vector.shape_cast %144 : vector<8x32xf32> to vector<1x8x32xf32>
    %152 = arith.truncf %151 : vector<1x8x32xf32> to vector<1x8x32xbf16>
    %153 = vector.extract_strided_slice %148 {offsets = [0, 0, 0], sizes = [1, 8, 8], strides = [1, 1, 1]} : vector<1x8x32xbf16> to vector<1x8x8xbf16>
    %154 = vector.extract_strided_slice %150 {offsets = [0, 0, 0], sizes = [1, 8, 8], strides = [1, 1, 1]} : vector<1x8x32xbf16> to vector<1x8x8xbf16>
    %155 = vector.extract_strided_slice %152 {offsets = [0, 0, 0], sizes = [1, 8, 8], strides = [1, 1, 1]} : vector<1x8x32xbf16> to vector<1x8x8xbf16>
    "tpu.trace_start"() <{level = 10 : i32, message = "bqd,bkd->bqk"}> : () -> ()
    %cst_41 = arith.constant dense<0.000000e+00> : vector<1x8x8xf32>
    %156 = tpu.matmul %153, %154, %cst_41 {dimension_numbers = #tpu.dot_dimension_numbers<[2], [2], [1], [1], [0, 0, 0, 1, 1, 1], [0], [0]>} : vector<1x8x8xbf16>, vector<1x8x8xbf16>, vector<1x8x8xf32> -> vector<1x8x8xf32>
    "tpu.trace_stop"() : () -> ()
    %cst_42 = arith.constant 0.353553385 : f32
    %157 = vector.broadcast %cst_42 : f32 to vector<1x8x8xf32>
    %158 = arith.mulf %156, %157 : vector<1x8x8xf32>
    %cst_43 = arith.constant dense<0xFF800000> : vector<1x8xf32>
    %159 = vector.multi_reduction <maximumf>, %158, %cst_43 [2] : vector<1x8x8xf32> to vector<1x8xf32>
    %160 = vector.shape_cast %159 : vector<1x8xf32> to vector<1x8x1xf32>
    %161 = vector.broadcast %160 : vector<1x8x1xf32> to vector<1x8x8xf32>
    %162 = arith.subf %158, %161 : vector<1x8x8xf32>
    %163 = math.exp %162 : vector<1x8x8xf32>
    %cst_44 = arith.constant dense<0.000000e+00> : vector<1x8xf32>
    %164 = vector.multi_reduction <add>, %163, %cst_44 [2] : vector<1x8x8xf32> to vector<1x8xf32>
    %165 = vector.shape_cast %164 : vector<1x8xf32> to vector<1x8x1xf32>
    %166 = tpu.reciprocal %165 {approx = true} : vector<1x8x1xf32> -> vector<1x8x1xf32>
    %167 = vector.broadcast %166 : vector<1x8x1xf32> to vector<1x8x8xf32>
    %168 = arith.mulf %163, %167 : vector<1x8x8xf32>
    %169 = arith.truncf %168 : vector<1x8x8xf32> to vector<1x8x8xbf16>
    "tpu.trace_start"() <{level = 10 : i32, message = "bqk,bkd->bqd"}> : () -> ()
    %cst_45 = arith.constant dense<0.000000e+00> : vector<1x8x8xf32>
    %170 = tpu.matmul %169, %155, %cst_45 {dimension_numbers = #tpu.dot_dimension_numbers<[2], [1], [1], [2], [0, 0, 0, 1, 1, 2], [0], [0]>} : vector<1x8x8xbf16>, vector<1x8x8xbf16>, vector<1x8x8xf32> -> vector<1x8x8xf32>
    "tpu.trace_stop"() : () -> ()
    %171 = vector.shape_cast %170 : vector<1x8x8xf32> to vector<8x8xf32>
    %172 = vector.extract_strided_slice %148 {offsets = [0, 0, 8], sizes = [1, 8, 8], strides = [1, 1, 1]} : vector<1x8x32xbf16> to vector<1x8x8xbf16>
    %173 = vector.extract_strided_slice %150 {offsets = [0, 0, 8], sizes = [1, 8, 8], strides = [1, 1, 1]} : vector<1x8x32xbf16> to vector<1x8x8xbf16>
    %174 = vector.extract_strided_slice %152 {offsets = [0, 0, 8], sizes = [1, 8, 8], strides = [1, 1, 1]} : vector<1x8x32xbf16> to vector<1x8x8xbf16>
    "tpu.trace_start"() <{level = 10 : i32, message = "bqd,bkd->bqk"}> : () -> ()
    %cst_46 = arith.constant dense<0.000000e+00> : vector<1x8x8xf32>
    %175 = tpu.matmul %172, %173, %cst_46 {dimension_numbers = #tpu.dot_dimension_numbers<[2], [2], [1], [1], [0, 0, 0, 1, 1, 1], [0], [0]>} : vector<1x8x8xbf16>, vector<1x8x8xbf16>, vector<1x8x8xf32> -> vector<1x8x8xf32>
    "tpu.trace_stop"() : () -> ()
    %cst_47 = arith.constant 0.353553385 : f32
    %176 = vector.broadcast %cst_47 : f32 to vector<1x8x8xf32>
    %177 = arith.mulf %175, %176 : vector<1x8x8xf32>
    %cst_48 = arith.constant dense<0xFF800000> : vector<1x8xf32>
    %178 = vector.multi_reduction <maximumf>, %177, %cst_48 [2] : vector<1x8x8xf32> to vector<1x8xf32>
    %179 = vector.shape_cast %178 : vector<1x8xf32> to vector<1x8x1xf32>
    %180 = vector.broadcast %179 : vector<1x8x1xf32> to vector<1x8x8xf32>
    %181 = arith.subf %177, %180 : vector<1x8x8xf32>
    %182 = math.exp %181 : vector<1x8x8xf32>
    %cst_49 = arith.constant dense<0.000000e+00> : vector<1x8xf32>
    %183 = vector.multi_reduction <add>, %182, %cst_49 [2] : vector<1x8x8xf32> to vector<1x8xf32>
    %184 = vector.shape_cast %183 : vector<1x8xf32> to vector<1x8x1xf32>
    %185 = tpu.reciprocal %184 {approx = true} : vector<1x8x1xf32> -> vector<1x8x1xf32>
    %186 = vector.broadcast %185 : vector<1x8x1xf32> to vector<1x8x8xf32>
    %187 = arith.mulf %182, %186 : vector<1x8x8xf32>
    %188 = arith.truncf %187 : vector<1x8x8xf32> to vector<1x8x8xbf16>
    "tpu.trace_start"() <{level = 10 : i32, message = "bqk,bkd->bqd"}> : () -> ()
    %cst_50 = arith.constant dense<0.000000e+00> : vector<1x8x8xf32>
    %189 = tpu.matmul %188, %174, %cst_50 {dimension_numbers = #tpu.dot_dimension_numbers<[2], [1], [1], [2], [0, 0, 0, 1, 1, 2], [0], [0]>} : vector<1x8x8xbf16>, vector<1x8x8xbf16>, vector<1x8x8xf32> -> vector<1x8x8xf32>
    "tpu.trace_stop"() : () -> ()
    %190 = vector.shape_cast %189 : vector<1x8x8xf32> to vector<8x8xf32>
    %191 = vector.extract_strided_slice %148 {offsets = [0, 0, 16], sizes = [1, 8, 8], strides = [1, 1, 1]} : vector<1x8x32xbf16> to vector<1x8x8xbf16>
    %192 = vector.extract_strided_slice %150 {offsets = [0, 0, 16], sizes = [1, 8, 8], strides = [1, 1, 1]} : vector<1x8x32xbf16> to vector<1x8x8xbf16>
    %193 = vector.extract_strided_slice %152 {offsets = [0, 0, 16], sizes = [1, 8, 8], strides = [1, 1, 1]} : vector<1x8x32xbf16> to vector<1x8x8xbf16>
    "tpu.trace_start"() <{level = 10 : i32, message = "bqd,bkd->bqk"}> : () -> ()
    %cst_51 = arith.constant dense<0.000000e+00> : vector<1x8x8xf32>
    %194 = tpu.matmul %191, %192, %cst_51 {dimension_numbers = #tpu.dot_dimension_numbers<[2], [2], [1], [1], [0, 0, 0, 1, 1, 1], [0], [0]>} : vector<1x8x8xbf16>, vector<1x8x8xbf16>, vector<1x8x8xf32> -> vector<1x8x8xf32>
    "tpu.trace_stop"() : () -> ()
    %cst_52 = arith.constant 0.353553385 : f32
    %195 = vector.broadcast %cst_52 : f32 to vector<1x8x8xf32>
    %196 = arith.mulf %194, %195 : vector<1x8x8xf32>
    %cst_53 = arith.constant dense<0xFF800000> : vector<1x8xf32>
    %197 = vector.multi_reduction <maximumf>, %196, %cst_53 [2] : vector<1x8x8xf32> to vector<1x8xf32>
    %198 = vector.shape_cast %197 : vector<1x8xf32> to vector<1x8x1xf32>
    %199 = vector.broadcast %198 : vector<1x8x1xf32> to vector<1x8x8xf32>
    %200 = arith.subf %196, %199 : vector<1x8x8xf32>
    %201 = math.exp %200 : vector<1x8x8xf32>
    %cst_54 = arith.constant dense<0.000000e+00> : vector<1x8xf32>
    %202 = vector.multi_reduction <add>, %201, %cst_54 [2] : vector<1x8x8xf32> to vector<1x8xf32>
    %203 = vector.shape_cast %202 : vector<1x8xf32> to vector<1x8x1xf32>
    %204 = tpu.reciprocal %203 {approx = true} : vector<1x8x1xf32> -> vector<1x8x1xf32>
    %205 = vector.broadcast %204 : vector<1x8x1xf32> to vector<1x8x8xf32>
    %206 = arith.mulf %201, %205 : vector<1x8x8xf32>
    %207 = arith.truncf %206 : vector<1x8x8xf32> to vector<1x8x8xbf16>
    "tpu.trace_start"() <{level = 10 : i32, message = "bqk,bkd->bqd"}> : () -> ()
    %cst_55 = arith.constant dense<0.000000e+00> : vector<1x8x8xf32>
    %208 = tpu.matmul %207, %193, %cst_55 {dimension_numbers = #tpu.dot_dimension_numbers<[2], [1], [1], [2], [0, 0, 0, 1, 1, 2], [0], [0]>} : vector<1x8x8xbf16>, vector<1x8x8xbf16>, vector<1x8x8xf32> -> vector<1x8x8xf32>
    "tpu.trace_stop"() : () -> ()
    %209 = vector.shape_cast %208 : vector<1x8x8xf32> to vector<8x8xf32>
    %210 = vector.extract_strided_slice %148 {offsets = [0, 0, 24], sizes = [1, 8, 8], strides = [1, 1, 1]} : vector<1x8x32xbf16> to vector<1x8x8xbf16>
    %211 = vector.extract_strided_slice %150 {offsets = [0, 0, 24], sizes = [1, 8, 8], strides = [1, 1, 1]} : vector<1x8x32xbf16> to vector<1x8x8xbf16>
    %212 = vector.extract_strided_slice %152 {offsets = [0, 0, 24], sizes = [1, 8, 8], strides = [1, 1, 1]} : vector<1x8x32xbf16> to vector<1x8x8xbf16>
    "tpu.trace_start"() <{level = 10 : i32, message = "bqd,bkd->bqk"}> : () -> ()
    %cst_56 = arith.constant dense<0.000000e+00> : vector<1x8x8xf32>
    %213 = tpu.matmul %210, %211, %cst_56 {dimension_numbers = #tpu.dot_dimension_numbers<[2], [2], [1], [1], [0, 0, 0, 1, 1, 1], [0], [0]>} : vector<1x8x8xbf16>, vector<1x8x8xbf16>, vector<1x8x8xf32> -> vector<1x8x8xf32>
    "tpu.trace_stop"() : () -> ()
    %cst_57 = arith.constant 0.353553385 : f32
    %214 = vector.broadcast %cst_57 : f32 to vector<1x8x8xf32>
    %215 = arith.mulf %213, %214 : vector<1x8x8xf32>
    %cst_58 = arith.constant dense<0xFF800000> : vector<1x8xf32>
    %216 = vector.multi_reduction <maximumf>, %215, %cst_58 [2] : vector<1x8x8xf32> to vector<1x8xf32>
    %217 = vector.shape_cast %216 : vector<1x8xf32> to vector<1x8x1xf32>
    %218 = vector.broadcast %217 : vector<1x8x1xf32> to vector<1x8x8xf32>
    %219 = arith.subf %215, %218 : vector<1x8x8xf32>
    %220 = math.exp %219 : vector<1x8x8xf32>
    %cst_59 = arith.constant dense<0.000000e+00> : vector<1x8xf32>
    %221 = vector.multi_reduction <add>, %220, %cst_59 [2] : vector<1x8x8xf32> to vector<1x8xf32>
    %222 = vector.shape_cast %221 : vector<1x8xf32> to vector<1x8x1xf32>
    %223 = tpu.reciprocal %222 {approx = true} : vector<1x8x1xf32> -> vector<1x8x1xf32>
    %224 = vector.broadcast %223 : vector<1x8x1xf32> to vector<1x8x8xf32>
    %225 = arith.mulf %220, %224 : vector<1x8x8xf32>
    %226 = arith.truncf %225 : vector<1x8x8xf32> to vector<1x8x8xbf16>
    "tpu.trace_start"() <{level = 10 : i32, message = "bqk,bkd->bqd"}> : () -> ()
    %cst_60 = arith.constant dense<0.000000e+00> : vector<1x8x8xf32>
    %227 = tpu.matmul %226, %212, %cst_60 {dimension_numbers = #tpu.dot_dimension_numbers<[2], [1], [1], [2], [0, 0, 0, 1, 1, 2], [0], [0]>} : vector<1x8x8xbf16>, vector<1x8x8xbf16>, vector<1x8x8xf32> -> vector<1x8x8xf32>
    "tpu.trace_stop"() : () -> ()
    %228 = vector.shape_cast %227 : vector<1x8x8xf32> to vector<8x8xf32>
    %229 = tpu.concatenate %171, %190, %209, %228 in 1 : vector<8x8xf32>, vector<8x8xf32>, vector<8x8xf32>, vector<8x8xf32> -> vector<8x32xf32>
    %230 = arith.truncf %229 : vector<8x32xf32> to vector<8x32xbf16>
    %cst_61 = arith.constant dense<0.000000e+00> : vector<8x32xf32>
    %231 = tpu.matmul %230, %145, %cst_61 {dimension_numbers = #tpu.dot_dimension_numbers<[1], [0], [0], [1], [0, 0, 1, 1], [], []>} : vector<8x32xbf16>, vector<32x32xbf16>, vector<8x32xf32> -> vector<8x32xf32>
    %232 = vector.broadcast %146 : vector<1x32xf32> to vector<8x32xf32>
    %233 = arith.addf %231, %232 : vector<8x32xf32>
    %234 = arith.addf %130, %233 : vector<8x32xf32>
    %235 = vector.extract_strided_slice %7 {offsets = [7, 0], sizes = [1, 32], strides = [1, 1]} : vector<16x128xf32> to vector<1x32xf32>
    %236 = vector.extract_strided_slice %7 {offsets = [8, 0], sizes = [1, 32], strides = [1, 1]} : vector<16x128xf32> to vector<1x32xf32>
    %cst_62 = arith.constant dense<0.000000e+00> : vector<8xf32>
    %237 = vector.multi_reduction <add>, %234, %cst_62 [1] : vector<8x32xf32> to vector<8xf32>
    %238 = vector.shape_cast %237 : vector<8xf32> to vector<8x1xf32>
    %cst_63 = arith.constant 3.200000e+01 : f32
    %239 = vector.broadcast %cst_63 : f32 to vector<8x1xf32>
    %240 = arith.divf %238, %239 : vector<8x1xf32>
    %241 = vector.broadcast %240 : vector<8x1xf32> to vector<8x32xf32>
    %242 = arith.subf %234, %241 : vector<8x32xf32>
    %243 = arith.mulf %242, %242 : vector<8x32xf32>
    %cst_64 = arith.constant dense<0.000000e+00> : vector<8xf32>
    %244 = vector.multi_reduction <add>, %243, %cst_64 [1] : vector<8x32xf32> to vector<8xf32>
    %245 = vector.shape_cast %244 : vector<8xf32> to vector<8x1xf32>
    %cst_65 = arith.constant 3.200000e+01 : f32
    %246 = vector.broadcast %cst_65 : f32 to vector<8x1xf32>
    %247 = arith.divf %245, %246 : vector<8x1xf32>
    %248 = vector.broadcast %240 : vector<8x1xf32> to vector<8x32xf32>
    %249 = arith.subf %234, %248 : vector<8x32xf32>
    %cst_66 = arith.constant 9.99999974E-6 : f32
    %250 = vector.broadcast %cst_66 : f32 to vector<8x1xf32>
    %251 = arith.addf %247, %250 : vector<8x1xf32>
    %252 = math.rsqrt %251 : vector<8x1xf32>
    %253 = vector.broadcast %252 : vector<8x1xf32> to vector<8x32xf32>
    %254 = arith.mulf %249, %253 : vector<8x32xf32>
    %255 = vector.broadcast %235 : vector<1x32xf32> to vector<8x32xf32>
    %256 = arith.mulf %254, %255 : vector<8x32xf32>
    %257 = vector.broadcast %236 : vector<1x32xf32> to vector<8x32xf32>
    %258 = arith.addf %256, %257 : vector<8x32xf32>
    %259 = vector.extract_strided_slice %6 {offsets = [0, 0], sizes = [32, 64], strides = [1, 1]} : vector<224x64xbf16> to vector<32x64xbf16>
    %260 = arith.truncf %258 : vector<8x32xf32> to vector<8x32xbf16>
    %cst_67 = arith.constant dense<0.000000e+00> : vector<8x64xf32>
    %261 = tpu.matmul %260, %259, %cst_67 {dimension_numbers = #tpu.dot_dimension_numbers<[1], [0], [0], [1], [0, 0, 1, 1], [], []>} : vector<8x32xbf16>, vector<32x64xbf16>, vector<8x64xf32> -> vector<8x64xf32>
    %262 = vector.extract_strided_slice %7 {offsets = [9, 0], sizes = [1, 64], strides = [1, 1]} : vector<16x128xf32> to vector<1x64xf32>
    %263 = vector.broadcast %262 : vector<1x64xf32> to vector<8x64xf32>
    %264 = arith.addf %261, %263 : vector<8x64xf32>
    %265 = vector.extract_strided_slice %7 {offsets = [13, 0], sizes = [1, 64], strides = [1, 1]} : vector<16x128xf32> to vector<1x64xf32>
    %cst_68 = arith.constant 0.000000e+00 : f32
    %266 = vector.broadcast %cst_68 : f32 to vector<8x64xf32>
    %267 = arith.cmpf oge, %264, %266 : vector<8x64xf32>
    %268 = vector.broadcast %265 : vector<1x64xf32> to vector<8x64xf32>
    %269 = arith.mulf %268, %264 : vector<8x64xf32>
    %270 = arith.select %267, %264, %269 : vector<8x64xi1>, vector<8x64xf32>
    %271 = vector.extract_strided_slice %6 {offsets = [32, 0], sizes = [64, 64], strides = [1, 1]} : vector<224x64xbf16> to vector<64x64xbf16>
    %272 = arith.truncf %270 : vector<8x64xf32> to vector<8x64xbf16>
    %cst_69 = arith.constant dense<0.000000e+00> : vector<8x64xf32>
    %273 = tpu.matmul %272, %271, %cst_69 {dimension_numbers = #tpu.dot_dimension_numbers<[1], [0], [0], [1], [0, 0, 1, 1], [], []>} : vector<8x64xbf16>, vector<64x64xbf16>, vector<8x64xf32> -> vector<8x64xf32>
    %274 = vector.extract_strided_slice %7 {offsets = [10, 0], sizes = [1, 64], strides = [1, 1]} : vector<16x128xf32> to vector<1x64xf32>
    %275 = vector.broadcast %274 : vector<1x64xf32> to vector<8x64xf32>
    %276 = arith.addf %273, %275 : vector<8x64xf32>
    %277 = vector.extract_strided_slice %7 {offsets = [14, 0], sizes = [1, 64], strides = [1, 1]} : vector<16x128xf32> to vector<1x64xf32>
    %cst_70 = arith.constant 0.000000e+00 : f32
    %278 = vector.broadcast %cst_70 : f32 to vector<8x64xf32>
    %279 = arith.cmpf oge, %276, %278 : vector<8x64xf32>
    %280 = vector.broadcast %277 : vector<1x64xf32> to vector<8x64xf32>
    %281 = arith.mulf %280, %276 : vector<8x64xf32>
    %282 = arith.select %279, %276, %281 : vector<8x64xi1>, vector<8x64xf32>
    %283 = vector.extract_strided_slice %6 {offsets = [96, 0], sizes = [64, 64], strides = [1, 1]} : vector<224x64xbf16> to vector<64x64xbf16>
    %284 = arith.truncf %282 : vector<8x64xf32> to vector<8x64xbf16>
    %cst_71 = arith.constant dense<0.000000e+00> : vector<8x64xf32>
    %285 = tpu.matmul %284, %283, %cst_71 {dimension_numbers = #tpu.dot_dimension_numbers<[1], [0], [0], [1], [0, 0, 1, 1], [], []>} : vector<8x64xbf16>, vector<64x64xbf16>, vector<8x64xf32> -> vector<8x64xf32>
    %286 = vector.extract_strided_slice %7 {offsets = [11, 0], sizes = [1, 64], strides = [1, 1]} : vector<16x128xf32> to vector<1x64xf32>
    %287 = vector.broadcast %286 : vector<1x64xf32> to vector<8x64xf32>
    %288 = arith.addf %285, %287 : vector<8x64xf32>
    %289 = vector.extract_strided_slice %7 {offsets = [15, 0], sizes = [1, 64], strides = [1, 1]} : vector<16x128xf32> to vector<1x64xf32>
    %cst_72 = arith.constant 0.000000e+00 : f32
    %290 = vector.broadcast %cst_72 : f32 to vector<8x64xf32>
    %291 = arith.cmpf oge, %288, %290 : vector<8x64xf32>
    %292 = vector.broadcast %289 : vector<1x64xf32> to vector<8x64xf32>
    %293 = arith.mulf %292, %288 : vector<8x64xf32>
    %294 = arith.select %291, %288, %293 : vector<8x64xi1>, vector<8x64xf32>
    %295 = vector.extract_strided_slice %6 {offsets = [160, 0], sizes = [64, 32], strides = [1, 1]} : vector<224x64xbf16> to vector<64x32xbf16>
    %296 = arith.truncf %294 : vector<8x64xf32> to vector<8x64xbf16>
    %cst_73 = arith.constant dense<0.000000e+00> : vector<8x32xf32>
    %297 = tpu.matmul %296, %295, %cst_73 {dimension_numbers = #tpu.dot_dimension_numbers<[1], [0], [0], [1], [0, 0, 1, 1], [], []>} : vector<8x64xbf16>, vector<64x32xbf16>, vector<8x32xf32> -> vector<8x32xf32>
    %298 = vector.extract_strided_slice %7 {offsets = [12, 0], sizes = [1, 32], strides = [1, 1]} : vector<16x128xf32> to vector<1x32xf32>
    %299 = vector.broadcast %298 : vector<1x32xf32> to vector<8x32xf32>
    %300 = arith.addf %297, %299 : vector<8x32xf32>
    %301 = arith.addf %258, %300 : vector<8x32xf32>
    %302 = vector.shape_cast %301 : vector<8x32xf32> to vector<1x8x32xf32>
    %c0_74 = arith.constant 0 : index
    %c0_75 = arith.constant 0 : index
    %c0_76 = arith.constant 0 : index
    %303 = vector.load %arg7[%c0_74, %c0_75, %c0_76] : memref<1x8x32xf32, #tpu.memory_space<vmem>>, vector<1x8x32xf32>
    tpu.vector_store %arg7[%c0_74, %c0_75, %c0_76], %302 {strides = array<i32>} : memref<1x8x32xf32, #tpu.memory_space<vmem>>, vector<1x8x32xf32>,
    return
  }
  func.func @transform_0(%arg0: i32) -> (i32, i32, i32) {
    %c0_i32 = arith.constant 0 : i32
    %c0_i32_0 = arith.constant 0 : i32
    %c0_i32_1 = arith.constant 0 : i32
    return %arg0, %c0_i32, %c0_i32_0 : i32, i32, i32
  }
  func.func @transform_1(%arg0: i32) -> (i32, i32, i32) {
    %c0_i32 = arith.constant 0 : i32
    %c0_i32_0 = arith.constant 0 : i32
    %c0_i32_1 = arith.constant 0 : i32
    return %arg0, %c0_i32, %c0_i32_0 : i32, i32, i32
  }
  func.func @transform_2(%arg0: i32) -> (i32, i32) {
    %c0_i32 = arith.constant 0 : i32
    %c0_i32_0 = arith.constant 0 : i32
    %c0_i32_1 = arith.constant 0 : i32
    return %c0_i32, %c0_i32_0 : i32, i32
  }
  func.func @transform_3(%arg0: i32) -> (i32, i32) {
    %c0_i32 = arith.constant 0 : i32
    %c0_i32_0 = arith.constant 0 : i32
    %c0_i32_1 = arith.constant 0 : i32
    return %c0_i32, %c0_i32_0 : i32, i32
  }
  func.func @transform_4(%arg0: i32) -> (i32, i32) {
    %c0_i32 = arith.constant 0 : i32
    %c0_i32_0 = arith.constant 0 : i32
    %c0_i32_1 = arith.constant 0 : i32
    return %c0_i32, %c0_i32_0 : i32, i32
  }
  func.func @transform_5(%arg0: i32) -> (i32, i32) {
    %c0_i32 = arith.constant 0 : i32
    %c0_i32_0 = arith.constant 0 : i32
    %c0_i32_1 = arith.constant 0 : i32
    return %c0_i32, %c0_i32_0 : i32, i32
  }
  func.func @transform_6(%arg0: i32) -> (i32, i32, i32) {
    %c0_i32 = arith.constant 0 : i32
    %c0_i32_0 = arith.constant 0 : i32
    %c0_i32_1 = arith.constant 0 : i32
    return %arg0, %c0_i32, %c0_i32_0 : i32, i32, i32
  }
}

</mosaic_0001>

<llo_original>
// kernel: tpu_custom_call.1
$region0: #{tpu_custom_call.1}
  #allocation0 [shape = 'u32[]', space=smem, size = 0x4, offset = 0x4, fixed_abs, tag = 'smem constant byte address 0x4 - core index']
  #allocation1 [shape = 'u32[72,128]{1,0:T(1,128)}', space=vmem, size = 0x9000, scoped, tag = 'internal scratch']
  %s0 = inlined_call_operand.vmem [shape: f32[2,8,32], index: 0, kind: input, shape index: {}]
  %s1 = inlined_call_operand.vmem [shape: f32[2,8,32], index: 1, kind: input, shape index: {}]
  %s2 = inlined_call_operand.vmem [shape: bf16[32,128], index: 2, kind: input, shape index: {}]
  %s3 = inlined_call_operand.vmem [shape: bf16[32,128], index: 3, kind: input, shape index: {}]
  %s4 = inlined_call_operand.vmem [shape: bf16[224,64], index: 4, kind: input, shape index: {}]
  %s5 = inlined_call_operand.vmem [shape: f32[16,128], index: 5, kind: input, shape index: {}]
  %s6 = inlined_call_operand.hbm [shape: f32[2,8,32], index: 6, kind: output, shape index: {}]
  %s7 = sld [smem:[#allocation0]]
  $region57: #{tpu_custom_call.1} parent=0
    _
  %s9 = ssub.s32 1, %s7
  %s10 = scalar_select 0, %s9, %s7
  $region1: #{tpu_custom_call.1} parent=0
    #allocation2 [shape = 'u8[8192]{0}', space=vmem, size = 0x2000, scoped, tag = 'output window, operand 0']
    #allocation3 [shape = 's32[2]{0}', space=sflag, size = 0x8, scoped, tag = 'scoped memory for tpu_custom_call.1']
    %11 = vsyncpa [#allocation3], 0
    %s12 = scalar_lea.sflag [#allocation3], 1
    %13 = vsyncpa %s12, 0
    loop: start=0, step=1, limit=4
    $region2: #{tpu_custom_call.1} parent=1 // loop_pre_header
      _
    $region3: #{tpu_custom_call.1} parent=1 // loop_header
      %s15 = sphi 0, %s19
      %p16 = scmp.ge.s32.totalorder %s15, 4
      %s25 = sphi 0, %s27
      %s28 = sphi 0, %s25
      %s29 = sphi 0, %s28
      %s45 = sphi 0, %s29
      %s51 = sphi 0, %s53
      %s54 = sphi 0, %s51
      %s55 = sphi 0, %s54
      %s71 = sphi 0, %s55
      %s75 = sphi 0, %s75
      %s77 = sphi 0, %s75
      %s78 = sphi 0, %s77
      %s92 = sphi 0, %s78
      %s96 = sphi 0, %s96
      %s98 = sphi 0, %s96
      %s99 = sphi 0, %s98
      %s113 = sphi 0, %s99
      %s117 = sphi 0, %s117
      %s119 = sphi 0, %s117
      %s120 = sphi 0, %s119
      %s134 = sphi 0, %s120
      %s138 = sphi 0, %s138
      %s140 = sphi 0, %s138
      %s141 = sphi 0, %s140
      %s155 = sphi 0, %s141
      %s161 = sphi 0, %s163
      %s164 = sphi 0, %s161
      %s165 = sphi 0, %s164
      %s181 = sphi 0, %s165
    $region4: #{tpu_custom_call.1} parent=1 // loop_header_branch
      %18 = sbr.rel (%p16) target = $region8
    $region5: #{tpu_custom_call.1} parent=1 // loop_body
      %s20 = ssub.s32 %s15, 1
      %s21 = ssub.s32 %s15, 2
      %s22 = sadd.s32 %s15, 1
      %s23 = ssub.s32 %s15, %s22
      %p24 = scmp.eq.s32.totalorder %s23, 0
      %s26 = sadd.s32 %s25, 1
      %s27 = scalar_select %p24, %s25, %s26
      %p30 = pneg %p24
      %p31 = scmp.eq.s32.totalorder %s15, 1
      %p32 = por %p30, %p31
      %p33 = scmp.ne.s32.totalorder %s25, %s28
      %p34 = scmp.eq.s32.totalorder %s15, 0
      %p35 = por %p33, %p34
      %p36 = scmp.ne.s32.totalorder %s25, %s28
      %p37 = scmp.eq.s32.totalorder %s20, 1
      %p38 = por %p36, %p37
      %p39 = scmp.ne.s32.totalorder %s28, %s29
      %p40 = scmp.eq.s32.totalorder %s20, 0
      %p41 = por %p39, %p40
      %p42 = scmp.ne.s32.totalorder %s28, %s29
      %p43 = scmp.eq.s32.totalorder %s21, 1
      %p44 = por %p42, %p43
      %p46 = scmp.ne.s32.totalorder %s29, %s45
      %p47 = scmp.eq.s32.totalorder %s21, 0
      %p48 = por %p46, %p47
      %s49 = ssub.s32 %s15, %s22
      %p50 = scmp.eq.s32.totalorder %s49, 0
      %s52 = sadd.s32 %s51, 1
      %s53 = scalar_select %p50, %s51, %s52
      %p56 = pneg %p50
      %p57 = scmp.eq.s32.totalorder %s15, 1
      %p58 = por %p56, %p57
      %p59 = scmp.ne.s32.totalorder %s51, %s54
      %p60 = scmp.eq.s32.totalorder %s15, 0
      %p61 = por %p59, %p60
      %p62 = scmp.ne.s32.totalorder %s51, %s54
      %p63 = scmp.eq.s32.totalorder %s20, 1
      %p64 = por %p62, %p63
      %p65 = scmp.ne.s32.totalorder %s54, %s55
      %p66 = scmp.eq.s32.totalorder %s20, 0
      %p67 = por %p65, %p66
      %p68 = scmp.ne.s32.totalorder %s54, %s55
      %p69 = scmp.eq.s32.totalorder %s21, 1
      %p70 = por %p68, %p69
      %p72 = scmp.ne.s32.totalorder %s55, %s71
      %p73 = scmp.eq.s32.totalorder %s21, 0
      %p74 = por %p72, %p73
      %s76 = sadd.s32 %s75, 1
      %p79 = scmp.eq.s32.totalorder %s15, 1
      %p80 = scmp.ne.s32.totalorder %s75, %s77
      %p81 = scmp.eq.s32.totalorder %s15, 0
      %p82 = por %p80, %p81
      %p83 = scmp.ne.s32.totalorder %s75, %s77
      %p84 = scmp.eq.s32.totalorder %s20, 1
      %p85 = por %p83, %p84
      %p86 = scmp.ne.s32.totalorder %s77, %s78
      %p87 = scmp.eq.s32.totalorder %s20, 0
      %p88 = por %p86, %p87
      %p89 = scmp.ne.s32.totalorder %s77, %s78
      %p90 = scmp.eq.s32.totalorder %s21, 1
      %p91 = por %p89, %p90
      %p93 = scmp.ne.s32.totalorder %s78, %s92
      %p94 = scmp.eq.s32.totalorder %s21, 0
      %p95 = por %p93, %p94
      %s97 = sadd.s32 %s96, 1
      %p100 = scmp.eq.s32.totalorder %s15, 1
      %p101 = scmp.ne.s32.totalorder %s96, %s98
      %p102 = scmp.eq.s32.totalorder %s15, 0
      %p103 = por %p101, %p102
      %p104 = scmp.ne.s32.totalorder %s96, %s98
      %p105 = scmp.eq.s32.totalorder %s20, 1
      %p106 = por %p104, %p105
      %p107 = scmp.ne.s32.totalorder %s98, %s99
      %p108 = scmp.eq.s32.totalorder %s20, 0
      %p109 = por %p107, %p108
      %p110 = scmp.ne.s32.totalorder %s98, %s99
      %p111 = scmp.eq.s32.totalorder %s21, 1
      %p112 = por %p110, %p111
      %p114 = scmp.ne.s32.totalorder %s99, %s113
      %p115 = scmp.eq.s32.totalorder %s21, 0
      %p116 = por %p114, %p115
      %s118 = sadd.s32 %s117, 1
      %p121 = scmp.eq.s32.totalorder %s15, 1
      %p122 = scmp.ne.s32.totalorder %s117, %s119
      %p123 = scmp.eq.s32.totalorder %s15, 0
      %p124 = por %p122, %p123
      %p125 = scmp.ne.s32.totalorder %s117, %s119
      %p126 = scmp.eq.s32.totalorder %s20, 1
      %p127 = por %p125, %p126
      %p128 = scmp.ne.s32.totalorder %s119, %s120
      %p129 = scmp.eq.s32.totalorder %s20, 0
      %p130 = por %p128, %p129
      %p131 = scmp.ne.s32.totalorder %s119, %s120
      %p132 = scmp.eq.s32.totalorder %s21, 1
      %p133 = por %p131, %p132
      %p135 = scmp.ne.s32.totalorder %s120, %s134
      %p136 = scmp.eq.s32.totalorder %s21, 0
      %p137 = por %p135, %p136
      %s139 = sadd.s32 %s138, 1
      %p142 = scmp.eq.s32.totalorder %s15, 1
      %p143 = scmp.ne.s32.totalorder %s138, %s140
      %p144 = scmp.eq.s32.totalorder %s15, 0
      %p145 = por %p143, %p144
      %p146 = scmp.ne.s32.totalorder %s138, %s140
      %p147 = scmp.eq.s32.totalorder %s20, 1
      %p148 = por %p146, %p147
      %p149 = scmp.ne.s32.totalorder %s140, %s141
      %p150 = scmp.eq.s32.totalorder %s20, 0
      %p151 = por %p149, %p150
      %p152 = scmp.ne.s32.totalorder %s140, %s141
      %p153 = scmp.eq.s32.totalorder %s21, 1
      %p154 = por %p152, %p153
      %p156 = scmp.ne.s32.totalorder %s141, %s155
      %p157 = scmp.eq.s32.totalorder %s21, 0
      %p158 = por %p156, %p157
      %s159 = ssub.s32 %s15, %s22
      %p160 = scmp.eq.s32.totalorder %s159, 0
      %s162 = sadd.s32 %s161, 1
      %s163 = scalar_select %p160, %s161, %s162
      %p166 = pneg %p160
      %p167 = scmp.eq.s32.totalorder %s15, 1
      %p168 = por %p166, %p167
      %p169 = scmp.ne.s32.totalorder %s161, %s164
      %p170 = scmp.eq.s32.totalorder %s15, 0
      %p171 = por %p169, %p170
      %p172 = scmp.ne.s32.totalorder %s161, %s164
      %p173 = scmp.eq.s32.totalorder %s20, 1
      %p174 = por %p172, %p173
      %p175 = scmp.ne.s32.totalorder %s164, %s165
      %p176 = scmp.eq.s32.totalorder %s20, 0
      %p177 = por %p175, %p176
      %p178 = scmp.ne.s32.totalorder %s164, %s165
      %p179 = scmp.eq.s32.totalorder %s21, 1
      %p180 = por %p178, %p179
      %p182 = scmp.ne.s32.totalorder %s165, %s181
      %p183 = scmp.eq.s32.totalorder %s21, 0
      %p184 = por %p182, %p183
      %p185 = scmp.le.s32.totalorder 1, %s15
      %p186 = scmp.lt.s32.totalorder %s15, 3
      %p187 = pnand %p185, %p186
      %p188 = pneg %p187
      // Predicated region
      $region9: #{tpu_custom_call.1} parent=5 // pred_check
        _
      $region10: #{tpu_custom_call.1} parent=5 // pred_check_branch
        %190 = sbr.rel (%p187) target = $region12
      $region11: #{tpu_custom_call.1} parent=5 // pred_region
        %s191 = ssub.s32 %s15, 1
        // Predicated region
        $region13: #{tpu_custom_call.1} parent=11 // pred_check
          %p192 = pneg %p88
        $region14: #{tpu_custom_call.1} parent=11 // pred_check_branch
          %194 = sbr.rel (%p192) target = $region16
        $region15: #{tpu_custom_call.1} parent=11 // pred_region
          _
        $region16: #{tpu_custom_call.1} parent=11 // pred_fallthru
          _
        // Predicated region
        $region17: #{tpu_custom_call.1} parent=11 // pred_check
          %p195 = pneg %p109
        $region18: #{tpu_custom_call.1} parent=11 // pred_check_branch
          %197 = sbr.rel (%p195) target = $region20
        $region19: #{tpu_custom_call.1} parent=11 // pred_region
          _
        $region20: #{tpu_custom_call.1} parent=11 // pred_fallthru
          _
        // Predicated region
        $region21: #{tpu_custom_call.1} parent=11 // pred_check
          %p198 = pneg %p130
        $region22: #{tpu_custom_call.1} parent=11 // pred_check_branch
          %200 = sbr.rel (%p198) target = $region24
        $region23: #{tpu_custom_call.1} parent=11 // pred_region
          _
        $region24: #{tpu_custom_call.1} parent=11 // pred_fallthru
          _
        // Predicated region
        $region25: #{tpu_custom_call.1} parent=11 // pred_check
          %p201 = pneg %p151
        $region26: #{tpu_custom_call.1} parent=11 // pred_check_branch
          %203 = sbr.rel (%p201) target = $region28
        $region27: #{tpu_custom_call.1} parent=11 // pred_region
          _
        $region28: #{tpu_custom_call.1} parent=11 // pred_fallthru
          _
      $region12: #{tpu_custom_call.1} parent=5 // pred_fallthru
        _
      %p204 = scmp.lt.s32.totalorder %s15, 2
      // Predicated region
      $region29: #{tpu_custom_call.1} parent=5 // pred_check
        %p205 = pneg %p204
      $region30: #{tpu_custom_call.1} parent=5 // pred_check_branch
        %207 = sbr.rel (%p205) target = $region32
      $region31: #{tpu_custom_call.1} parent=5 // pred_region
        // Predicated region
        $region33: #{tpu_custom_call.1} parent=31 // pred_check
          %p208 = pneg %p35
        $region34: #{tpu_custom_call.1} parent=31 // pred_check_branch
          %210 = sbr.rel (%p208) target = $region36
        $region35: #{tpu_custom_call.1} parent=31 // pred_region
          %p211 = scmp.lt.s32.totalorder %s15, 1
          %s212 = scalar_select %p211, %s15, 1
          %s213 = smul.addr %s212, 8
          %s214 = scalar_lea.vmem %s0, %s213
        $region36: #{tpu_custom_call.1} parent=31 // pred_fallthru
          _
        // Predicated region
        $region37: #{tpu_custom_call.1} parent=31 // pred_check
          %p215 = pneg %p61
        $region38: #{tpu_custom_call.1} parent=31 // pred_check_branch
          %217 = sbr.rel (%p215) target = $region40
        $region39: #{tpu_custom_call.1} parent=31 // pred_region
          %p218 = scmp.lt.s32.totalorder %s15, 1
          %s219 = scalar_select %p218, %s15, 1
          %s220 = smul.addr %s219, 8
          %s221 = scalar_lea.vmem %s1, %s220
        $region40: #{tpu_custom_call.1} parent=31 // pred_fallthru
          _
      $region32: #{tpu_custom_call.1} parent=5 // pred_fallthru
        _
      %p222 = scmp.le.s32.totalorder 1, %s15
      %p223 = scmp.lt.s32.totalorder %s15, 3
      %p224 = pnand %p222, %p223
      %p225 = pneg %p224
      // Predicated region
      $region41: #{tpu_custom_call.1} parent=5 // pred_check
        _
      $region42: #{tpu_custom_call.1} parent=5 // pred_check_branch
        %227 = sbr.rel (%p224) target = $region44
      $region43: #{tpu_custom_call.1} parent=5 // pred_region
        %s228 = ssub.s32 %s15, 1
        %p229 = scmp.lt.s32.totalorder %s20, 1
        %s230 = scalar_select %p229, %s20, 1
        %s231 = smul.addr %s230, 8
        %s232 = scalar_lea.vmem %s0, %s231
        %p233 = pneg %p41
        %p234 = pneg %p38
        %p235 = scmp.lt.s32.totalorder %s20, 1
        %s236 = scalar_select %p235, %s20, 1
        %s237 = smul.addr %s236, 8
        %s238 = scalar_lea.vmem %s1, %s237
        %p239 = pneg %p67
        %p240 = pneg %p64
        %p241 = pneg %p88
        %p242 = pneg %p85
        %p243 = pneg %p109
        %p244 = pneg %p106
        %p245 = pneg %p130
        %p246 = pneg %p127
        %p247 = pneg %p151
        %p248 = pneg %p148
        %p249 = pneg %p177
        %p250 = pneg %p174
        %s251 = sand.u32 %s164, 1
        %s252 = scalar_lea.sflag [#allocation3], %s251
        %s253 = sand.u32 %s164, 1
        %s254 = smul.addr %s253, 8
        %s255 = scalar_lea.vmem [#allocation2], %s254
        %p256 = scmp.lt.s32.totalorder %s20, 1
        %s257 = scalar_select %p256, %s20, 1
        %s258 = smul.addr %s257, 8
        %s259 = scalar_lea.vmem %s0, %s258
        %p260 = scmp.lt.s32.totalorder %s20, 1
        %s261 = scalar_select %p260, %s20, 1
        %s262 = smul.addr %s261, 8
        %s263 = scalar_lea.vmem %s1, %s262
        %v265 = vld [vmem:[%s259] sm:$0xff]
        %v266 = vld [vmem:[%s263] sm:$0xff]
        %v267 = vld [vmem:[%s2] sm:$0xf]
        %v268 = vld [vmem:[%s2 + $0x4] sm:$0xf]
        %v269 = vld [vmem:[%s2 + $0x8] sm:$0xf]
        %v270 = vld [vmem:[%s2 + $0xc] sm:$0xf]
        %v271 = vld [vmem:[%s3] sm:$0xf]
        %v272 = vld [vmem:[%s3 + $0x4] sm:$0xf]
        %v273 = vld [vmem:[%s3 + $0x8] sm:$0xf]
        %v274 = vld [vmem:[%s3 + $0xc] sm:$0xf]
        %v275 = vld [vmem:[%s4] sm:$0xf]
        %v276 = vld [vmem:[%s4 + $0x4] sm:$0xf]
        %v277 = vld [vmem:[%s4 + $0x8] sm:$0xf]
        %v278 = vld [vmem:[%s4 + $0xc] sm:$0xf]
        %v279 = vld [vmem:[%s4 + $0x10] sm:$0xf]
        %v280 = vld [vmem:[%s4 + $0x14] sm:$0xf]
        %v281 = vld [vmem:[%s4 + $0x18] sm:$0xf]
        %v282 = vld [vmem:[%s4 + $0x1c] sm:$0xf]
        %v283 = vld [vmem:[%s4 + $0x20] sm:$0xf]
        %v284 = vld [vmem:[%s4 + $0x24] sm:$0xf]
        %v285 = vld [vmem:[%s4 + $0x28] sm:$0xf]
        %v286 = vld [vmem:[%s4 + $0x2c] sm:$0xf]
        %v287 = vld [vmem:[%s4 + $0x30] sm:$0xf]
        %v288 = vld [vmem:[%s4 + $0x34] sm:$0xf]
        %v289 = vld [vmem:[%s4 + $0x38] sm:$0xf]
        %v290 = vld [vmem:[%s4 + $0x3c] sm:$0xf]
        %v291 = vld [vmem:[%s4 + $0x40] sm:$0xf]
        %v292 = vld [vmem:[%s4 + $0x44] sm:$0xf]
        %v293 = vld [vmem:[%s4 + $0x48] sm:$0xf]
        %v294 = vld [vmem:[%s4 + $0x4c] sm:$0xf]
        %v295 = vld [vmem:[%s4 + $0x50] sm:$0xf]
        %v296 = vld [vmem:[%s4 + $0x54] sm:$0xf]
        %v297 = vld [vmem:[%s4 + $0x58] sm:$0xf]
        %v298 = vld [vmem:[%s4 + $0x5c] sm:$0xf]
        %v299 = vld [vmem:[%s4 + $0x60] sm:$0xf]
        %v300 = vld [vmem:[%s4 + $0x64] sm:$0xf]
        %v301 = vld [vmem:[%s4 + $0x68] sm:$0xf]
        %v302 = vld [vmem:[%s4 + $0x6c] sm:$0xf]
        %v303 = vld [vmem:[%s5] sm:$0xff]
        %v304 = vld [vmem:[%s5 + $0x8] sm:$0xff]
        %v305 = vpack.c.bf16 %v265, %v265
        %v306 = vperm.slane %v303, 0
        %v311 = vunpack.c.l.b16 %v267
        %v312 = vunpack.c.l.b16 %v268
        %v313 = vunpack.c.l.b16 %v269
        %v314 = vunpack.c.l.b16 %v270
        %v315 = vpack.c.b16 %v312, %v311
        %v316 = vpack.c.b16 %v314, %v313
        %vm319 = vcmask 261120
        %v321 = vsel %vm319, %v305, 0
        %323 = vmatpush.bf16.msra.mxu0 0
        %324 = vmatpush.bf16.msra.mxu0 0
        %325 = vmatpush.bf16.msra.mxu0 0
        %326 = vmatpush.bf16.msra.mxu0 0
        %327 = vmatpush.bf16.msra.mxu0 0
        %328 = vmatpush.bf16.msra.mxu0 0
        %329 = vmatpush.bf16.msra.mxu0 %v316
        %330 = vmatpush.bf16.msra.mxu0 %v315
        %331 = vmatmul.bf16.gmra.mxu0 %v321
        %v332 = vpop.f32.mrf.mxu0
        %v333 = vadd.f32 %v306, %v332
        %v334 = vpop.f32.mrf.mxu0
        %335 = vdwg.mxu0
        %v336 = vpack.c.bf16 %v333, %v333
        %v338 = vunpack.c.l.b16 %v336
        %v339 = vpack.c.b16 %v338, %v338
        %340 = vrot.lane.b32.xlu0 %v339, 96
        %v341 = vpop.permute.xlu0 %340
        %vm342 = vcmask 64512
        %v344 = vsel %vm342, %v336, 0
        %v347 = vsel %vm342, %v341, 0
        %349 = vmatpush.bf16.xpose.msra.mxu0 0
        %350 = vmatpush.bf16.xpose.msra.mxu0 0
        %351 = vmatpush.bf16.xpose.msra.mxu0 0
        %352 = vmatpush.bf16.xpose.msra.mxu0 0
        %353 = vmatpush.bf16.xpose.msra.mxu0 0
        %354 = vmatpush.bf16.xpose.msra.mxu0 0
        %355 = vmatpush.bf16.xpose.msra.mxu0 0
        %356 = vmatpush.bf16.xpose.msra.mxu0 %v347
        %357 = vmatmul.bf16.gmra.mxu0 %v344
        %v358 = vpop.f32.mrf.mxu0
        %v359 = vadd.f32 0.0, %v358
        %v360 = vpop.f32.mrf.mxu0
        %361 = vdwg.mxu0
        %v362 = vmul.f32 %v359, 0.35355338
        %v363 = vsel %vm342, %v362, -inf
        %364 = vmax.xlane.f32.xlu0 %v363
        %v365 = vpop.xlane.xlu0 %364
        %v366 = vsub.f32 %v362, %v365
        %v367 = vmul.f32 %v366, 1.442695
        %v368 = vpow.pop %v367
        %v369 = vsel %vm342, %v368, 0.0
        %370 = vadd.xlane.f32.xlu0 %v369
        %v371 = vpop.xlane.xlu0 %370
        %v372 = vrcp.pop %v371
        %v373 = vmul.f32 %v368, %v372
        %v374 = vpack.c.bf16 %v373, %v373
        %375 = vrot.lane.b32.xlu0 %v339, 64
        %v376 = vpop.permute.xlu0 %375
        %v378 = vsel %vm342, %v374, 0
        %vm380 = vcmask 1043456
        %v382 = vsel %vm380, %v376, 0
        %384 = vmatpush.bf16.msra.mxu0 0
        %385 = vmatpush.bf16.msra.mxu0 0
        %386 = vmatpush.bf16.msra.mxu0 0
        %387 = vmatpush.bf16.msra.mxu0 0
        %388 = vmatpush.bf16.msra.mxu0 0
        %389 = vmatpush.bf16.msra.mxu0 0
        %390 = vmatpush.bf16.msra.mxu0 0
        %391 = vmatpush.bf16.msra.mxu0 %v382
        %392 = vmatmul.bf16.gmra.mxu0 %v378
        %v393 = vpop.f32.mrf.mxu0
        %v394 = vadd.f32 0.0, %v393
        %v395 = vpop.f32.mrf.mxu0
        %396 = vdwg.mxu0
        %397 = vrot.lane.b32.xlu0 %v339, 120
        %v398 = vpop.permute.xlu0 %397
        %399 = vrot.lane.b32.xlu0 %v339, 88
        %v400 = vpop.permute.xlu0 %399
        %v402 = vsel %vm342, %v398, 0
        %v405 = vsel %vm342, %v400, 0
        %407 = vmatpush.bf16.xpose.msra.mxu0 0
        %408 = vmatpush.bf16.xpose.msra.mxu0 0
        %409 = vmatpush.bf16.xpose.msra.mxu0 0
        %410 = vmatpush.bf16.xpose.msra.mxu0 0
        %411 = vmatpush.bf16.xpose.msra.mxu0 0
        %412 = vmatpush.bf16.xpose.msra.mxu0 0
        %413 = vmatpush.bf16.xpose.msra.mxu0 0
        %414 = vmatpush.bf16.xpose.msra.mxu0 %v405
        %415 = vmatmul.bf16.gmra.mxu0 %v402
        %v416 = vpop.f32.mrf.mxu0
        %v417 = vadd.f32 0.0, %v416
        %v418 = vpop.f32.mrf.mxu0
        %419 = vdwg.mxu0
        %v420 = vmul.f32 %v417, 0.35355338
        %v421 = vsel %vm342, %v420, -inf
        %422 = vmax.xlane.f32.xlu0 %v421
        %v423 = vpop.xlane.xlu0 %422
        %v424 = vsub.f32 %v420, %v423
        %v425 = vmul.f32 %v424, 1.442695
        %v426 = vpow.pop %v425
        %v427 = vsel %vm342, %v426, 0.0
        %428 = vadd.xlane.f32.xlu0 %v427
        %v429 = vpop.xlane.xlu0 %428
        %v430 = vrcp.pop %v429
        %v431 = vmul.f32 %v426, %v430
        %v432 = vpack.c.bf16 %v431, %v431
        %433 = vrot.lane.b32.xlu0 %v339, 56
        %v434 = vpop.permute.xlu0 %433
        %v436 = vsel %vm342, %v432, 0
        %v439 = vsel %vm380, %v434, 0
        %441 = vmatpush.bf16.msra.mxu0 0
        %442 = vmatpush.bf16.msra.mxu0 0
        %443 = vmatpush.bf16.msra.mxu0 0
        %444 = vmatpush.bf16.msra.mxu0 0
        %445 = vmatpush.bf16.msra.mxu0 0
        %446 = vmatpush.bf16.msra.mxu0 0
        %447 = vmatpush.bf16.msra.mxu0 0
        %448 = vmatpush.bf16.msra.mxu0 %v439
        %449 = vmatmul.bf16.gmra.mxu0 %v436
        %v450 = vpop.f32.mrf.mxu0
        %v451 = vadd.f32 0.0, %v450
        %v452 = vpop.f32.mrf.mxu0
        %453 = vdwg.mxu0
        %454 = vrot.lane.b32.xlu0 %v339, 112
        %v455 = vpop.permute.xlu0 %454
        %456 = vrot.lane.b32.xlu0 %v339, 80
        %v457 = vpop.permute.xlu0 %456
        %v459 = vsel %vm342, %v455, 0
        %v462 = vsel %vm342, %v457, 0
        %464 = vmatpush.bf16.xpose.msra.mxu0 0
        %465 = vmatpush.bf16.xpose.msra.mxu0 0
        %466 = vmatpush.bf16.xpose.msra.mxu0 0
        %467 = vmatpush.bf16.xpose.msra.mxu0 0
        %468 = vmatpush.bf16.xpose.msra.mxu0 0
        %469 = vmatpush.bf16.xpose.msra.mxu0 0
        %470 = vmatpush.bf16.xpose.msra.mxu0 0
        %471 = vmatpush.bf16.xpose.msra.mxu0 %v462
        %472 = vmatmul.bf16.gmra.mxu0 %v459
        %v473 = vpop.f32.mrf.mxu0
        %v474 = vadd.f32 0.0, %v473
        %v475 = vpop.f32.mrf.mxu0
        %476 = vdwg.mxu0
        %v477 = vmul.f32 %v474, 0.35355338
        %v478 = vsel %vm342, %v477, -inf
        %479 = vmax.xlane.f32.xlu0 %v478
        %v480 = vpop.xlane.xlu0 %479
        %v481 = vsub.f32 %v477, %v480
        %v482 = vmul.f32 %v481, 1.442695
        %v483 = vpow.pop %v482
        %v484 = vsel %vm342, %v483, 0.0
        %485 = vadd.xlane.f32.xlu0 %v484
        %v486 = vpop.xlane.xlu0 %485
        %v487 = vrcp.pop %v486
        %v488 = vmul.f32 %v483, %v487
        %v489 = vpack.c.bf16 %v488, %v488
        %490 = vrot.lane.b32.xlu0 %v339, 48
        %v491 = vpop.permute.xlu0 %490
        %v493 = vsel %vm342, %v489, 0
        %v496 = vsel %vm380, %v491, 0
        %498 = vmatpush.bf16.msra.mxu0 0
        %499 = vmatpush.bf16.msra.mxu0 0
        %500 = vmatpush.bf16.msra.mxu0 0
        %501 = vmatpush.bf16.msra.mxu0 0
        %502 = vmatpush.bf16.msra.mxu0 0
        %503 = vmatpush.bf16.msra.mxu0 0
        %504 = vmatpush.bf16.msra.mxu0 0
        %505 = vmatpush.bf16.msra.mxu0 %v496
        %506 = vmatmul.bf16.gmra.mxu0 %v493
        %v507 = vpop.f32.mrf.mxu0
        %v508 = vadd.f32 0.0, %v507
        %v509 = vpop.f32.mrf.mxu0
        %510 = vdwg.mxu0
        %511 = vrot.lane.b32.xlu0 %v339, 104
        %v512 = vpop.permute.xlu0 %511
        %513 = vrot.lane.b32.xlu0 %v339, 72
        %v514 = vpop.permute.xlu0 %513
        %v516 = vsel %vm342, %v512, 0
        %v519 = vsel %vm342, %v514, 0
        %521 = vmatpush.bf16.xpose.msra.mxu0 0
        %522 = vmatpush.bf16.xpose.msra.mxu0 0
        %523 = vmatpush.bf16.xpose.msra.mxu0 0
        %524 = vmatpush.bf16.xpose.msra.mxu0 0
        %525 = vmatpush.bf16.xpose.msra.mxu0 0
        %526 = vmatpush.bf16.xpose.msra.mxu0 0
        %527 = vmatpush.bf16.xpose.msra.mxu0 0
        %528 = vmatpush.bf16.xpose.msra.mxu0 %v519
        %529 = vmatmul.bf16.gmra.mxu0 %v516
        %v530 = vpop.f32.mrf.mxu0
        %v531 = vadd.f32 0.0, %v530
        %v532 = vpop.f32.mrf.mxu0
        %533 = vdwg.mxu0
        %v534 = vmul.f32 %v531, 0.35355338
        %v535 = vsel %vm342, %v534, -inf
        %536 = vmax.xlane.f32.xlu0 %v535
        %v537 = vpop.xlane.xlu0 %536
        %v538 = vsub.f32 %v534, %v537
        %v539 = vmul.f32 %v538, 1.442695
        %v540 = vpow.pop %v539
        %v541 = vsel %vm342, %v540, 0.0
        %542 = vadd.xlane.f32.xlu0 %v541
        %v543 = vpop.xlane.xlu0 %542
        %v544 = vrcp.pop %v543
        %v545 = vmul.f32 %v540, %v544
        %v546 = vpack.c.bf16 %v545, %v545
        %547 = vrot.lane.b32.xlu0 %v339, 40
        %v548 = vpop.permute.xlu0 %547
        %v550 = vsel %vm342, %v546, 0
        %v553 = vsel %vm380, %v548, 0
        %555 = vmatpush.bf16.msra.mxu0 0
        %556 = vmatpush.bf16.msra.mxu0 0
        %557 = vmatpush.bf16.msra.mxu0 0
        %558 = vmatpush.bf16.msra.mxu0 0
        %559 = vmatpush.bf16.msra.mxu0 0
        %560 = vmatpush.bf16.msra.mxu0 0
        %561 = vmatpush.bf16.msra.mxu0 0
        %562 = vmatpush.bf16.msra.mxu0 %v553
        %563 = vmatmul.bf16.gmra.mxu0 %v550
        %v564 = vpop.f32.mrf.mxu0
        %v565 = vadd.f32 0.0, %v564
        %v566 = vpop.f32.mrf.mxu0
        %567 = vdwg.mxu0
        %569 = vrot.lane.b32.xlu0 %v451, 8
        %v570 = vpop.permute.xlu0 %569
        %573 = vrot.lane.b32.xlu0 %v508, 16
        %v574 = vpop.permute.xlu0 %573
        %577 = vrot.lane.b32.xlu0 %v565, 24
        %v578 = vpop.permute.xlu0 %577
        %v580 = vsel %vm342, %v394, %v570
        %vm581 = vcmask 130048
        %v582 = vsel %vm581, %v580, %v574
        %vm583 = vcmask 195584
        %v584 = vsel %vm583, %v582, %v578
        %v585 = vpack.c.bf16 %v584, %v584
        %v586 = vperm.slane %v303, 1
        %587 = vrot.lane.b32.xlu0 %v315, 32
        %v588 = vpop.permute.xlu0 %587
        %589 = vrot.lane.b32.xlu0 %v316, 32
        %v590 = vpop.permute.xlu0 %589
        %v594 = vsel %vm319, %v585, 0
        %596 = vmatpush.bf16.msra.mxu0 0
        %597 = vmatpush.bf16.msra.mxu0 0
        %598 = vmatpush.bf16.msra.mxu0 0
        %599 = vmatpush.bf16.msra.mxu0 0
        %600 = vmatpush.bf16.msra.mxu0 0
        %601 = vmatpush.bf16.msra.mxu0 0
        %602 = vmatpush.bf16.msra.mxu0 %v590
        %603 = vmatpush.bf16.msra.mxu0 %v588
        %604 = vmatmul.bf16.gmra.mxu0 %v594
        %v605 = vpop.f32.mrf.mxu0
        %v606 = vadd.f32 %v586, %v605
        %v607 = vpop.f32.mrf.mxu0
        %608 = vdwg.mxu0
        %v609 = vadd.f32 %v265, %v606
        %v610 = vsel %vm319, %v609, 0.0
        %611 = vadd.xlane.f32.xlu0 %v610
        %v612 = vpop.xlane.xlu0 %611
        %v613 = vrcp.pop 32.0
        %v614 = vmul.f32 32.0, %v613
        %v615 = vsub.f32 1.0, %v614
        %v616 = vmul.f32 %v613, %v615
        %v617 = vadd.f32 %v613, %v616
        %vm618 = vweird.f32 %v613
        %v619 = vsel %vm618, %v613, %v617
        %v620 = vmul.f32 %v612, %v619
        %v621 = vsub.f32 %v609, %v620
        %v622 = vmul.f32 %v621, %v621
        %v623 = vsel %vm319, %v622, 0.0
        %624 = vadd.xlane.f32.xlu0 %v623
        %v625 = vpop.xlane.xlu0 %624
        %v626 = vmul.f32 %v625, %v619
        %v627 = vadd.f32 %v626, 1e-05
        %v628 = vrsqrt.pop %v627
        %v629 = vmul.f32 %v628, %v627
        %v630 = vmul.f32 %v629, %v628
        %v631 = vmul.f32 0.5, %v630
        %v632 = vsub.f32 1.5, %v631
        %v633 = vmul.f32 %v628, %v632
        %vm634 = vweird.f32 %v627
        %vm635 = vweird.f32 %v628
        %vm636 = vmor %vm634, %vm635
        %v637 = vsel %vm636, %v628, %v633
        %v638 = vmul.f32 %v621, %v637
        %v639 = vperm.slane %v303, 5
        %v640 = vmul.f32 %v638, %v639
        %v641 = vperm.slane %v303, 6
        %v642 = vadd.f32 %v640, %v641
        %v643 = vpack.c.bf16 %v642, %v642
        %v644 = vperm.slane %v303, 2
        %v649 = vunpack.c.l.b16 %v271
        %v650 = vunpack.c.l.b16 %v272
        %v651 = vunpack.c.l.b16 %v273
        %v652 = vunpack.c.l.b16 %v274
        %v653 = vpack.c.b16 %v650, %v649
        %v654 = vpack.c.b16 %v652, %v651
        %v658 = vsel %vm319, %v643, 0
        %660 = vmatpush.bf16.msra.mxu0 0
        %661 = vmatpush.bf16.msra.mxu0 0
        %662 = vmatpush.bf16.msra.mxu0 0
        %663 = vmatpush.bf16.msra.mxu0 0
        %664 = vmatpush.bf16.msra.mxu0 0
        %665 = vmatpush.bf16.msra.mxu0 0
        %666 = vmatpush.bf16.msra.mxu0 %v654
        %667 = vmatpush.bf16.msra.mxu0 %v653
        %668 = vmatmul.bf16.gmra.mxu0 %v658
        %v669 = vpop.f32.mrf.mxu0
        %v670 = vadd.f32 %v644, %v669
        %v671 = vpop.f32.mrf.mxu0
        %672 = vdwg.mxu0
        %v673 = vpack.c.bf16 %v266, %v266
        %v674 = vperm.slane %v303, 3
        %675 = vrot.lane.b32.xlu0 %v653, 96
        %v676 = vpop.permute.xlu0 %675
        %677 = vrot.lane.b32.xlu0 %v654, 96
        %v678 = vpop.permute.xlu0 %677
        %v682 = vsel %vm319, %v673, 0
        %684 = vmatpush.bf16.msra.mxu0 0
        %685 = vmatpush.bf16.msra.mxu0 0
        %686 = vmatpush.bf16.msra.mxu0 0
        %687 = vmatpush.bf16.msra.mxu0 0
        %688 = vmatpush.bf16.msra.mxu0 0
        %689 = vmatpush.bf16.msra.mxu0 0
        %690 = vmatpush.bf16.msra.mxu0 %v678
        %691 = vmatpush.bf16.msra.mxu0 %v676
        %692 = vmatmul.bf16.gmra.mxu0 %v682
        %v693 = vpop.f32.mrf.mxu0
        %v694 = vadd.f32 %v674, %v693
        %v695 = vpop.f32.mrf.mxu0
        %696 = vdwg.mxu0
        %v697 = vpack.c.bf16 %v670, %v670
        %v698 = vpack.c.bf16 %v694, %v694
        %v700 = vsel %vm342, %v697, 0
        %v703 = vsel %vm342, %v698, 0
        %705 = vmatpush.bf16.xpose.msra.mxu0 0
        %706 = vmatpush.bf16.xpose.msra.mxu0 0
        %707 = vmatpush.bf16.xpose.msra.mxu0 0
        %708 = vmatpush.bf16.xpose.msra.mxu0 0
        %709 = vmatpush.bf16.xpose.msra.mxu0 0
        %710 = vmatpush.bf16.xpose.msra.mxu0 0
        %711 = vmatpush.bf16.xpose.msra.mxu0 0
        %712 = vmatpush.bf16.xpose.msra.mxu0 %v703
        %713 = vmatmul.bf16.gmra.mxu0 %v700
        %v714 = vpop.f32.mrf.mxu0
        %v715 = vadd.f32 0.0, %v714
        %v716 = vpop.f32.mrf.mxu0
        %717 = vdwg.mxu0
        %v718 = vmul.f32 %v715, 0.35355338
        %v719 = vsel %vm342, %v718, -inf
        %720 = vmax.xlane.f32.xlu0 %v719
        %v721 = vpop.xlane.xlu0 %720
        %v722 = vsub.f32 %v718, %v721
        %v723 = vmul.f32 %v722, 1.442695
        %v724 = vpow.pop %v723
        %v725 = vsel %vm342, %v724, 0.0
        %726 = vadd.xlane.f32.xlu0 %v725
        %v727 = vpop.xlane.xlu0 %726
        %v728 = vrcp.pop %v727
        %v729 = vmul.f32 %v724, %v728
        %v730 = vpack.c.bf16 %v729, %v729
        %v732 = vunpack.c.l.b16 %v698
        %v733 = vpack.c.b16 %v732, %v732
        %734 = vrot.lane.b32.xlu0 %v733, 96
        %v735 = vpop.permute.xlu0 %734
        %v737 = vsel %vm342, %v730, 0
        %v740 = vsel %vm380, %v735, 0
        %742 = vmatpush.bf16.msra.mxu0 0
        %743 = vmatpush.bf16.msra.mxu0 0
        %744 = vmatpush.bf16.msra.mxu0 0
        %745 = vmatpush.bf16.msra.mxu0 0
        %746 = vmatpush.bf16.msra.mxu0 0
        %747 = vmatpush.bf16.msra.mxu0 0
        %748 = vmatpush.bf16.msra.mxu0 0
        %749 = vmatpush.bf16.msra.mxu0 %v740
        %750 = vmatmul.bf16.gmra.mxu0 %v737
        %v751 = vpop.f32.mrf.mxu0
        %v752 = vadd.f32 0.0, %v751
        %v753 = vpop.f32.mrf.mxu0
        %754 = vdwg.mxu0
        %v756 = vunpack.c.l.b16 %v697
        %v757 = vpack.c.b16 %v756, %v756
        %758 = vrot.lane.b32.xlu0 %v757, 120
        %v759 = vpop.permute.xlu0 %758
        %760 = vrot.lane.b32.xlu0 %v733, 120
        %v761 = vpop.permute.xlu0 %760
        %v763 = vsel %vm342, %v759, 0
        %v766 = vsel %vm342, %v761, 0
        %768 = vmatpush.bf16.xpose.msra.mxu0 0
        %769 = vmatpush.bf16.xpose.msra.mxu0 0
        %770 = vmatpush.bf16.xpose.msra.mxu0 0
        %771 = vmatpush.bf16.xpose.msra.mxu0 0
        %772 = vmatpush.bf16.xpose.msra.mxu0 0
        %773 = vmatpush.bf16.xpose.msra.mxu0 0
        %774 = vmatpush.bf16.xpose.msra.mxu0 0
        %775 = vmatpush.bf16.xpose.msra.mxu0 %v766
        %776 = vmatmul.bf16.gmra.mxu0 %v763
        %v777 = vpop.f32.mrf.mxu0
        %v778 = vadd.f32 0.0, %v777
        %v779 = vpop.f32.mrf.mxu0
        %780 = vdwg.mxu0
        %v781 = vmul.f32 %v778, 0.35355338
        %v782 = vsel %vm342, %v781, -inf
        %783 = vmax.xlane.f32.xlu0 %v782
        %v784 = vpop.xlane.xlu0 %783
        %v785 = vsub.f32 %v781, %v784
        %v786 = vmul.f32 %v785, 1.442695
        %v787 = vpow.pop %v786
        %v788 = vsel %vm342, %v787, 0.0
        %789 = vadd.xlane.f32.xlu0 %v788
        %v790 = vpop.xlane.xlu0 %789
        %v791 = vrcp.pop %v790
        %v792 = vmul.f32 %v787, %v791
        %v793 = vpack.c.bf16 %v792, %v792
        %794 = vrot.lane.b32.xlu0 %v733, 88
        %v795 = vpop.permute.xlu0 %794
        %v797 = vsel %vm342, %v793, 0
        %v800 = vsel %vm380, %v795, 0
        %802 = vmatpush.bf16.msra.mxu0 0
        %803 = vmatpush.bf16.msra.mxu0 0
        %804 = vmatpush.bf16.msra.mxu0 0
        %805 = vmatpush.bf16.msra.mxu0 0
        %806 = vmatpush.bf16.msra.mxu0 0
        %807 = vmatpush.bf16.msra.mxu0 0
        %808 = vmatpush.bf16.msra.mxu0 0
        %809 = vmatpush.bf16.msra.mxu0 %v800
        %810 = vmatmul.bf16.gmra.mxu0 %v797
        %v811 = vpop.f32.mrf.mxu0
        %v812 = vadd.f32 0.0, %v811
        %v813 = vpop.f32.mrf.mxu0
        %814 = vdwg.mxu0
        %815 = vrot.lane.b32.xlu0 %v757, 112
        %v816 = vpop.permute.xlu0 %815
        %817 = vrot.lane.b32.xlu0 %v733, 112
        %v818 = vpop.permute.xlu0 %817
        %v820 = vsel %vm342, %v816, 0
        %v823 = vsel %vm342, %v818, 0
        %825 = vmatpush.bf16.xpose.msra.mxu0 0
        %826 = vmatpush.bf16.xpose.msra.mxu0 0
        %827 = vmatpush.bf16.xpose.msra.mxu0 0
        %828 = vmatpush.bf16.xpose.msra.mxu0 0
        %829 = vmatpush.bf16.xpose.msra.mxu0 0
        %830 = vmatpush.bf16.xpose.msra.mxu0 0
        %831 = vmatpush.bf16.xpose.msra.mxu0 0
        %832 = vmatpush.bf16.xpose.msra.mxu0 %v823
        %833 = vmatmul.bf16.gmra.mxu0 %v820
        %v834 = vpop.f32.mrf.mxu0
        %v835 = vadd.f32 0.0, %v834
        %v836 = vpop.f32.mrf.mxu0
        %837 = vdwg.mxu0
        %v838 = vmul.f32 %v835, 0.35355338
        %v839 = vsel %vm342, %v838, -inf
        %840 = vmax.xlane.f32.xlu0 %v839
        %v841 = vpop.xlane.xlu0 %840
        %v842 = vsub.f32 %v838, %v841
        %v843 = vmul.f32 %v842, 1.442695
        %v844 = vpow.pop %v843
        %v845 = vsel %vm342, %v844, 0.0
        %846 = vadd.xlane.f32.xlu0 %v845
        %v847 = vpop.xlane.xlu0 %846
        %v848 = vrcp.pop %v847
        %v849 = vmul.f32 %v844, %v848
        %v850 = vpack.c.bf16 %v849, %v849
        %851 = vrot.lane.b32.xlu0 %v733, 80
        %v852 = vpop.permute.xlu0 %851
        %v854 = vsel %vm342, %v850, 0
        %v857 = vsel %vm380, %v852, 0
        %859 = vmatpush.bf16.msra.mxu0 0
        %860 = vmatpush.bf16.msra.mxu0 0
        %861 = vmatpush.bf16.msra.mxu0 0
        %862 = vmatpush.bf16.msra.mxu0 0
        %863 = vmatpush.bf16.msra.mxu0 0
        %864 = vmatpush.bf16.msra.mxu0 0
        %865 = vmatpush.bf16.msra.mxu0 0
        %866 = vmatpush.bf16.msra.mxu0 %v857
        %867 = vmatmul.bf16.gmra.mxu0 %v854
        %v868 = vpop.f32.mrf.mxu0
        %v869 = vadd.f32 0.0, %v868
        %v870 = vpop.f32.mrf.mxu0
        %871 = vdwg.mxu0
        %872 = vrot.lane.b32.xlu0 %v757, 104
        %v873 = vpop.permute.xlu0 %872
        %874 = vrot.lane.b32.xlu0 %v733, 104
        %v875 = vpop.permute.xlu0 %874
        %v877 = vsel %vm342, %v873, 0
        %v880 = vsel %vm342, %v875, 0
        %882 = vmatpush.bf16.xpose.msra.mxu0 0
        %883 = vmatpush.bf16.xpose.msra.mxu0 0
        %884 = vmatpush.bf16.xpose.msra.mxu0 0
        %885 = vmatpush.bf16.xpose.msra.mxu0 0
        %886 = vmatpush.bf16.xpose.msra.mxu0 0
        %887 = vmatpush.bf16.xpose.msra.mxu0 0
        %888 = vmatpush.bf16.xpose.msra.mxu0 0
        %889 = vmatpush.bf16.xpose.msra.mxu0 %v880
        %890 = vmatmul.bf16.gmra.mxu0 %v877
        %v891 = vpop.f32.mrf.mxu0
        %v892 = vadd.f32 0.0, %v891
        %v893 = vpop.f32.mrf.mxu0
        %894 = vdwg.mxu0
        %v895 = vmul.f32 %v892, 0.35355338
        %v896 = vsel %vm342, %v895, -inf
        %897 = vmax.xlane.f32.xlu0 %v896
        %v898 = vpop.xlane.xlu0 %897
        %v899 = vsub.f32 %v895, %v898
        %v900 = vmul.f32 %v899, 1.442695
        %v901 = vpow.pop %v900
        %v902 = vsel %vm342, %v901, 0.0
        %903 = vadd.xlane.f32.xlu0 %v902
        %v904 = vpop.xlane.xlu0 %903
        %v905 = vrcp.pop %v904
        %v906 = vmul.f32 %v901, %v905
        %v907 = vpack.c.bf16 %v906, %v906
        %908 = vrot.lane.b32.xlu0 %v733, 72
        %v909 = vpop.permute.xlu0 %908
        %v911 = vsel %vm342, %v907, 0
        %v914 = vsel %vm380, %v909, 0
        %916 = vmatpush.bf16.msra.mxu0 0
        %917 = vmatpush.bf16.msra.mxu0 0
        %918 = vmatpush.bf16.msra.mxu0 0
        %919 = vmatpush.bf16.msra.mxu0 0
        %920 = vmatpush.bf16.msra.mxu0 0
        %921 = vmatpush.bf16.msra.mxu0 0
        %922 = vmatpush.bf16.msra.mxu0 0
        %923 = vmatpush.bf16.msra.mxu0 %v914
        %924 = vmatmul.bf16.gmra.mxu0 %v911
        %v925 = vpop.f32.mrf.mxu0
        %v926 = vadd.f32 0.0, %v925
        %v927 = vpop.f32.mrf.mxu0
        %928 = vdwg.mxu0
        %930 = vrot.lane.b32.xlu0 %v812, 8
        %v931 = vpop.permute.xlu0 %930
        %934 = vrot.lane.b32.xlu0 %v869, 16
        %v935 = vpop.permute.xlu0 %934
        %938 = vrot.lane.b32.xlu0 %v926, 24
        %v939 = vpop.permute.xlu0 %938
        %v941 = vsel %vm342, %v752, %v931
        %v942 = vsel %vm581, %v941, %v935
        %v943 = vsel %vm583, %v942, %v939
        %v944 = vpack.c.bf16 %v943, %v943
        %v945 = vperm.slane %v303, 4
        %946 = vrot.lane.b32.xlu0 %v653, 32
        %v947 = vpop.permute.xlu0 %946
        %948 = vrot.lane.b32.xlu0 %v654, 32
        %v949 = vpop.permute.xlu0 %948
        %v953 = vsel %vm319, %v944, 0
        %955 = vmatpush.bf16.msra.mxu0 0
        %956 = vmatpush.bf16.msra.mxu0 0
        %957 = vmatpush.bf16.msra.mxu0 0
        %958 = vmatpush.bf16.msra.mxu0 0
        %959 = vmatpush.bf16.msra.mxu0 0
        %960 = vmatpush.bf16.msra.mxu0 0
        %961 = vmatpush.bf16.msra.mxu0 %v949
        %962 = vmatpush.bf16.msra.mxu0 %v947
        %963 = vmatmul.bf16.gmra.mxu0 %v953
        %v964 = vpop.f32.mrf.mxu0
        %v965 = vadd.f32 %v945, %v964
        %v966 = vpop.f32.mrf.mxu0
        %967 = vdwg.mxu0
        %v968 = vadd.f32 %v642, %v965
        %v969 = vsel %vm319, %v968, 0.0
        %970 = vadd.xlane.f32.xlu0 %v969
        %v971 = vpop.xlane.xlu0 %970
        %v972 = vmul.f32 %v971, %v619
        %v973 = vsub.f32 %v968, %v972
        %v974 = vmul.f32 %v973, %v973
        %v975 = vsel %vm319, %v974, 0.0
        %976 = vadd.xlane.f32.xlu0 %v975
        %v977 = vpop.xlane.xlu0 %976
        %v978 = vmul.f32 %v977, %v619
        %v979 = vadd.f32 %v978, 1e-05
        %v980 = vrsqrt.pop %v979
        %v981 = vmul.f32 %v980, %v979
        %v982 = vmul.f32 %v981, %v980
        %v983 = vmul.f32 0.5, %v982
        %v984 = vsub.f32 1.5, %v983
        %v985 = vmul.f32 %v980, %v984
        %vm986 = vweird.f32 %v979
        %vm987 = vweird.f32 %v980
        %vm988 = vmor %vm986, %vm987
        %v989 = vsel %vm988, %v980, %v985
        %v990 = vmul.f32 %v973, %v989
        %v991 = vperm.slane %v303, 7
        %v992 = vmul.f32 %v990, %v991
        %v993 = vperm.slane %v304, 0
        %v994 = vadd.f32 %v992, %v993
        %v995 = vpack.c.bf16 %v994, %v994
        %v996 = vperm.slane %v304, 1
        %v1001 = vunpack.c.l.b16 %v275
        %v1002 = vunpack.c.l.b16 %v276
        %v1003 = vunpack.c.l.b16 %v277
        %v1004 = vunpack.c.l.b16 %v278
        %v1005 = vpack.c.b16 %v1002, %v1001
        %v1006 = vpack.c.b16 %v1004, %v1003
        %v1010 = vsel %vm319, %v995, 0
        %1012 = vmatpush.bf16.msra.mxu0 0
        %1013 = vmatpush.bf16.msra.mxu0 0
        %1014 = vmatpush.bf16.msra.mxu0 0
        %1015 = vmatpush.bf16.msra.mxu0 0
        %1016 = vmatpush.bf16.msra.mxu0 0
        %1017 = vmatpush.bf16.msra.mxu0 0
        %1018 = vmatpush.bf16.msra.mxu0 %v1006
        %1019 = vmatpush.bf16.msra.mxu0 %v1005
        %1020 = vmatmul.bf16.gmra.mxu0 %v1010
        %v1021 = vpop.f32.mrf.mxu0
        %v1022 = vadd.f32 %v996, %v1021
        %v1023 = vpop.f32.mrf.mxu0
        %1024 = vdwg.mxu0
        %vm1025 = vcmp.ge.f32.partialorder %v1022, 0.0
        %v1026 = vperm.slane %v304, 5
        %v1027 = vmul.f32 %v1026, %v1022
        %v1028 = vsel %vm1025, %v1022, %v1027
        %v1029 = vpack.c.bf16 %v1028, %v1028
        %v1030 = vperm.slane %v304, 2
        %v1039 = vunpack.c.l.b16 %v279
        %v1040 = vunpack.c.l.b16 %v280
        %v1041 = vunpack.c.l.b16 %v281
        %v1042 = vunpack.c.l.b16 %v282
        %v1043 = vunpack.c.l.b16 %v283
        %v1044 = vunpack.c.l.b16 %v284
        %v1045 = vunpack.c.l.b16 %v285
        %v1046 = vunpack.c.l.b16 %v286
        %v1047 = vpack.c.b16 %v1040, %v1039
        %v1048 = vpack.c.b16 %v1042, %v1041
        %v1049 = vpack.c.b16 %v1044, %v1043
        %v1050 = vpack.c.b16 %v1046, %v1045
        %vm1055 = vcmask 523264
        %v1057 = vsel %vm1055, %v1029, 0
        %1059 = vmatpush.bf16.msra.mxu0 0
        %1060 = vmatpush.bf16.msra.mxu0 0
        %1061 = vmatpush.bf16.msra.mxu0 0
        %1062 = vmatpush.bf16.msra.mxu0 0
        %1063 = vmatpush.bf16.msra.mxu0 %v1050
        %1064 = vmatpush.bf16.msra.mxu0 %v1049
        %1065 = vmatpush.bf16.msra.mxu0 %v1048
        %1066 = vmatpush.bf16.msra.mxu0 %v1047
        %1067 = vmatmul.bf16.gmra.mxu0 %v1057
        %v1068 = vpop.f32.mrf.mxu0
        %v1069 = vadd.f32 %v1030, %v1068
        %v1070 = vpop.f32.mrf.mxu0
        %1071 = vdwg.mxu0
        %vm1072 = vcmp.ge.f32.partialorder %v1069, 0.0
        %v1073 = vperm.slane %v304, 6
        %v1074 = vmul.f32 %v1073, %v1069
        %v1075 = vsel %vm1072, %v1069, %v1074
        %v1076 = vpack.c.bf16 %v1075, %v1075
        %v1077 = vperm.slane %v304, 3
        %v1086 = vunpack.c.l.b16 %v287
        %v1087 = vunpack.c.l.b16 %v288
        %v1088 = vunpack.c.l.b16 %v289
        %v1089 = vunpack.c.l.b16 %v290
        %v1090 = vunpack.c.l.b16 %v291
        %v1091 = vunpack.c.l.b16 %v292
        %v1092 = vunpack.c.l.b16 %v293
        %v1093 = vunpack.c.l.b16 %v294
        %v1094 = vpack.c.b16 %v1087, %v1086
        %v1095 = vpack.c.b16 %v1089, %v1088
        %v1096 = vpack.c.b16 %v1091, %v1090
        %v1097 = vpack.c.b16 %v1093, %v1092
        %v1103 = vsel %vm1055, %v1076, 0
        %1105 = vmatpush.bf16.msra.mxu0 0
        %1106 = vmatpush.bf16.msra.mxu0 0
        %1107 = vmatpush.bf16.msra.mxu0 0
        %1108 = vmatpush.bf16.msra.mxu0 0
        %1109 = vmatpush.bf16.msra.mxu0 %v1097
        %1110 = vmatpush.bf16.msra.mxu0 %v1096
        %1111 = vmatpush.bf16.msra.mxu0 %v1095
        %1112 = vmatpush.bf16.msra.mxu0 %v1094
        %1113 = vmatmul.bf16.gmra.mxu0 %v1103
        %v1114 = vpop.f32.mrf.mxu0
        %v1115 = vadd.f32 %v1077, %v1114
        %v1116 = vpop.f32.mrf.mxu0
        %1117 = vdwg.mxu0
        %vm1118 = vcmp.ge.f32.partialorder %v1115, 0.0
        %v1119 = vperm.slane %v304, 7
        %v1120 = vmul.f32 %v1119, %v1115
        %v1121 = vsel %vm1118, %v1115, %v1120
        %v1122 = vpack.c.bf16 %v1121, %v1121
        %v1123 = vperm.slane %v304, 4
        %v1132 = vunpack.c.l.b16 %v295
        %v1133 = vunpack.c.l.b16 %v296
        %v1134 = vunpack.c.l.b16 %v297
        %v1135 = vunpack.c.l.b16 %v298
        %v1136 = vunpack.c.l.b16 %v299
        %v1137 = vunpack.c.l.b16 %v300
        %v1138 = vunpack.c.l.b16 %v301
        %v1139 = vunpack.c.l.b16 %v302
        %v1140 = vpack.c.b16 %v1133, %v1132
        %v1141 = vpack.c.b16 %v1135, %v1134
        %v1142 = vpack.c.b16 %v1137, %v1136
        %v1143 = vpack.c.b16 %v1139, %v1138
        %v1149 = vsel %vm1055, %v1122, 0
        %1151 = vmatpush.bf16.msra.mxu0 0
        %1152 = vmatpush.bf16.msra.mxu0 0
        %1153 = vmatpush.bf16.msra.mxu0 0
        %1154 = vmatpush.bf16.msra.mxu0 0
        %1155 = vmatpush.bf16.msra.mxu0 %v1143
        %1156 = vmatpush.bf16.msra.mxu0 %v1142
        %1157 = vmatpush.bf16.msra.mxu0 %v1141
        %1158 = vmatpush.bf16.msra.mxu0 %v1140
        %1159 = vmatmul.bf16.gmra.mxu0 %v1149
        %v1160 = vpop.f32.mrf.mxu0
        %v1161 = vadd.f32 %v1123, %v1160
        %v1162 = vpop.f32.mrf.mxu0
        %1163 = vdwg.mxu0
        %v1164 = vadd.f32 %v994, %v1161
        %1165 = vst.msk [vmem:[%s255] sm:$0xff] %vm319, %v1164
        %s1166 = sand.u32 %s164, 1
        %s1167 = scalar_lea.sflag [#allocation3], %s1166
        %s1168 = sand.u32 %s164, 1
        %s1169 = smul.addr %s1168, 8
        %s1170 = scalar_lea.vmem [#allocation2], %s1169
        // Predicated region
        $region45: #{tpu_custom_call.1} parent=43 // pred_check
          %p1171 = pneg %p174
        $region46: #{tpu_custom_call.1} parent=43 // pred_check_branch
          %1173 = sbr.rel (%p1171) target = $region48
        $region47: #{tpu_custom_call.1} parent=43 // pred_region
          %1175 = vsyncadd %s1167, 0
          %s1176 = smul.addr %s20, 8
          %s1177 = scalar_lea.hbm %s6, %s1176
          %s1179 = sshll.u32 %s1170, 4
          %s1180 = int_to_ptr.vmem [resolvable:$true] %s1179
          %s1181 = sshll.u32 %s1177, 4
          %s1182 = int_to_ptr.hbm [resolvable:$true] %s1181
          %1184 = dma.vmem_to_hbm [thread:$0]  %s1180, 128, %s1182, %s1167
        $region48: #{tpu_custom_call.1} parent=43 // pred_fallthru
          _
      $region44: #{tpu_custom_call.1} parent=5 // pred_fallthru
        _
      %p1185 = scmp.le.s32.totalorder 2, %s15
      // Predicated region
      $region49: #{tpu_custom_call.1} parent=5 // pred_check
        %p1186 = pneg %p1185
      $region50: #{tpu_custom_call.1} parent=5 // pred_check_branch
        %1188 = sbr.rel (%p1186) target = $region52
      $region51: #{tpu_custom_call.1} parent=5 // pred_region
        %s1189 = ssub.s32 %s15, 2
        // Predicated region
        $region53: #{tpu_custom_call.1} parent=51 // pred_check
          %p1190 = pneg %p180
        $region54: #{tpu_custom_call.1} parent=51 // pred_check_branch
          %1192 = sbr.rel (%p1190) target = $region56
        $region55: #{tpu_custom_call.1} parent=51 // pred_region
          %s1193 = sand.u32 %s165, 1
          %s1194 = scalar_lea.sflag [#allocation3], %s1193
          %s1195 = sand.u32 %s165, 1
          %s1196 = smul.addr %s1195, 8
          %s1197 = scalar_lea.vmem [#allocation2], %s1196
          %1199 = dma.done %s1194, 128
        $region56: #{tpu_custom_call.1} parent=51 // pred_fallthru
          _
      $region52: #{tpu_custom_call.1} parent=5 // pred_fallthru
        _
    $region6: #{tpu_custom_call.1} parent=1 // loop_footer
      %s19 = sadd.s32 1, %s15
    $region7: #{tpu_custom_call.1} parent=1 // loop_footer_branch
      %14 = sbr.rel target = $region3
    $region8: #{tpu_custom_call.1} parent=1 // loop_exit
      _
    %1200 = vsyncpa [#allocation3], 1
    %s1201 = scalar_lea.sflag [#allocation3], 1
    %1202 = vsyncpa %s1201, 1

</llo_original>
